<compile_context>
chip_gen: v6e
topology: v6e:2x2x1
jax: 0.10.0
libtpu: 0.0.40
codegen_flags: <defaults>
</compile_context>

<pallas_src>
import numpy as np
import jax
import jax.numpy as jnp
from jax import lax
from jax.experimental import pallas as pl
from jax.experimental.pallas import tpu as pltpu

# ----- stand-ins for the argparse `param` object -----
IMAGE_SIZE = 32     # param.image_size
Z_SIZE = 16         # param.z_size
G_H_SIZE = 8        # param.G_h_size
N_COLORS = 3        # param.n_colors
SELU = False        # param.SELU -> BatchNorm + ReLU path
BATCH = 2
K = 4               # kernel_size of every ConvTranspose2d
BN_EPS = 1e-5

# Sub-pixel decomposition tables for ConvTranspose2d(k=4, stride=2, pad=1).
# Output row oh = 2*i + rh gathers from kernel rows _KH[rh]; the matching
# read offsets into the 1-padded input (padded row = i + offset) are _OFF[rh].
_KH = {0: (1, 3), 1: (0, 2)}
_OFF = {0: (1, 0), 1: (2, 1)}


# --------------------------- Pallas kernels ---------------------------------

def _make_fused_kernel(n_par, m, use_bn, act):
    """n_par sub-pixel matmuls (bf16 in / f32 acc on the MXU) + BatchNorm
    (training-mode batch stats over all parity blocks) + ReLU / Tanh."""

    def kernel(*refs):
        if use_bn:
            a_ref, w_ref, gamma_ref, beta_ref, o_ref = refs
        else:
            a_ref, w_ref, o_ref = refs

        # One (Cout, Kc) @ (Kc, M) matmul per output-parity class; M (the
        # flattened batch*spatial dim) sits on the lane axis.
        ys = [jnp.dot(w_ref[p, :, :], a_ref[p, :, :],
                      preferred_element_type=jnp.float32)
              for p in range(n_par)]

        if use_bn:
            count = float(n_par * m)
            mean = sum(jnp.sum(y, axis=1, keepdims=True) for y in ys) / count
            var = sum(jnp.sum((y - mean) * (y - mean), axis=1, keepdims=True)
                      for y in ys) / count
            scale = lax.rsqrt(var + BN_EPS) * gamma_ref[...]
            shift = beta_ref[...] - mean * scale
            ys = [y * scale + shift for y in ys]

        for p in range(n_par):
            y = ys[p]
            if act == "relu":
                y = jnp.maximum(y, 0.0)
            else:  # "tanh"
                y = jnp.tanh(y)
            o_ref[p, :, :] = y

    return kernel


def _fused_layer_pallas(a, w_mat, gamma, beta, use_bn, act):
    """a: (P, Kc, M) bf16, w_mat: (P, Cout, Kc) bf16 -> (P, Cout, M) f32."""
    n_par, kc, m = a.shape
    _, cout, _ = w_mat.shape

    in_specs = [pl.BlockSpec((n_par, kc, m), lambda i: (0, 0, 0)),
                pl.BlockSpec((n_par, cout, kc), lambda i: (0, 0, 0))]
    inputs = [a, w_mat]
    if use_bn:
        in_specs += [pl.BlockSpec((cout, 1), lambda i: (0, 0)),
                     pl.BlockSpec((cout, 1), lambda i: (0, 0))]
        inputs += [gamma, beta]

    flops = 2 * n_par * cout * kc * m + 8 * n_par * cout * m
    transcendentals = n_par * cout * m if act == "tanh" else cout
    bytes_accessed = ((a.size + w_mat.size) * 2 + n_par * cout * m * 4
                      + (2 * cout * 4 if use_bn else 0))

    return pl.pallas_call(
        _make_fused_kernel(n_par, m, use_bn, act),
        out_shape=jax.ShapeDtypeStruct((n_par, cout, m), jnp.float32),
        grid=(1,),   # whole layer fits comfortably in VMEM at these shapes
        in_specs=in_specs,
        out_specs=pl.BlockSpec((n_par, cout, m), lambda i: (0, 0, 0)),
        compiler_params=pltpu.CompilerParams(
            dimension_semantics=("arbitrary",)),
        cost_estimate=pl.CostEstimate(flops=flops,
                                      transcendentals=transcendentals,
                                      bytes_accessed=bytes_accessed),
    )(*inputs)


# --------------------------- JAX glue (layout only, no FLOPs) ---------------

def _im2col_stride1_T(x_nhwc, pad):
    """Transposed im2col for the stride-1 Start layer (1x1 spatial input).
    Returns A: (1, K*K*Cin, B*Ho*Wo); rows (kh, kw, ci), cols (b, oh, ow)."""
    b, h, w, c = x_nhwc.shape
    pp = K - 1 - pad
    ho, wo = h - 1 + K - 2 * pad, w - 1 + K - 2 * pad
    xp = jnp.pad(x_nhwc, ((0, 0), (pp, pp), (pp, pp), (0, 0)))
    taps = [xp[:, kh:kh + ho, kw:kw + wo, :]
            for kh in range(K) for kw in range(K)]
    a = jnp.stack(taps, axis=0)                          # (16, B, Ho, Wo, C)
    a = a.transpose(0, 4, 1, 2, 3).reshape(K * K * c, b * ho * wo)
    return a[None], (b, ho, wo)


def _im2col_subpixel_T(x_nhwc):
    """Transposed im2col for ConvTranspose2d(k=4, s=2, p=1), decomposed into
    4 output-parity classes -> no structural zeros materialized.
    Returns A: (4, 4*Cin, B*H*W); parity p = 2*rh + rw; rows (th, tw, ci)."""
    b, h, w, c = x_nhwc.shape
    xp = jnp.pad(x_nhwc, ((0, 0), (1, 1), (1, 1), (0, 0)))
    pars = []
    for rh in (0, 1):
        for rw in (0, 1):
            taps = [xp[:, ah:ah + h, aw:aw + w, :]
                    for ah in _OFF[rh] for aw in _OFF[rw]]
            t = jnp.stack(taps, axis=0)                  # (4, B, H, W, C)
            pars.append(t.transpose(0, 4, 1, 2, 3).reshape(4 * c, b * h * w))
    return jnp.stack(pars, axis=0), (b, h, w)


def _weight_stride1_T(w):
    """(Cin, Cout, K, K) -> (1, Cout, K*K*Cin) bf16; cols (kh, kw, ci),
    spatially flipped (gather form of the stride-1 transposed conv)."""
    wf = w[:, :, ::-1, ::-1]
    m = wf.transpose(1, 2, 3, 0).reshape(w.shape[1], -1)
    return m[None].astype(jnp.bfloat16)


def _weight_subpixel_T(w):
    """(Cin, Cout, K, K) -> (4, Cout, 4*Cin) bf16; parity p = 2*rh + rw,
    cols (th, tw, ci) matching _im2col_subpixel_T (no flip needed)."""
    cout = w.shape[1]
    mats = []
    for rh in (0, 1):
        for rw in (0, 1):
            sub = jnp.stack(
                [jnp.stack([w[:, :, kh, kw] for kw in _KH[rw]], axis=0)
                 for kh in _KH[rh]], axis=0)             # (th, tw, Cin, Cout)
            mats.append(sub.transpose(3, 0, 1, 2).reshape(cout, -1))
    return jnp.stack(mats, axis=0).astype(jnp.bfloat16)


def _to_nhwc(y, dims, stride):
    """Un-shuffle the kernel output (P, Cout, M) back to NHWC."""
    cout = y.shape[1]
    if stride == 1:
        b, ho, wo = dims
        return y[0].reshape(cout, b, ho, wo).transpose(1, 2, 3, 0)
    b, h, w = dims
    y = y.reshape(2, 2, cout, b, h, w)                   # (rh, rw, co, b, i, j)
    return y.transpose(3, 4, 0, 5, 1, 2).reshape(b, 2 * h, 2 * w, cout)


# --------------------------- model definition -------------------------------

def layer_specs():
    mult = IMAGE_SIZE // 8
    specs = [(Z_SIZE, G_H_SIZE * mult, 1, 0, True, "relu")]   # Start
    while mult > 1:                                           # Middle
        specs.append((G_H_SIZE * mult, G_H_SIZE * (mult // 2), 2, 1, True, "relu"))
        mult //= 2
    specs.append((G_H_SIZE, N_COLORS, 2, 1, False, "tanh"))   # End
    return specs


def init_params(key):
    params = []
    for (ci, co, s, p, bn, act) in layer_specs():
        key, wk = jax.random.split(key)
        # deterministic DCGAN-style init (N(0, 0.02)); BN gamma=1, beta=0
        w = 0.02 * jax.random.normal(wk, (ci, co, K, K), jnp.float32)
        wmat = _weight_stride1_T(w) if s == 1 else _weight_subpixel_T(w)
        params.append(dict(
            w=w, wmat=wmat,
            gamma=jnp.ones((co, 1), jnp.float32) if bn else None,
            beta=jnp.zeros((co, 1), jnp.float32) if bn else None,
            stride=s, pad=p, bn=bn, act=act))
    return params


def dcgan_g_forward(params, x_nchw):
    x = jnp.transpose(x_nchw, (0, 2, 3, 1))              # NCHW -> NHWC
    for lp in params:
        if lp["stride"] == 1:
            a, dims = _im2col_stride1_T(x, lp["pad"])
        else:
            a, dims = _im2col_subpixel_T(x)
        y = _fused_layer_pallas(a.astype(jnp.bfloat16), lp["wmat"],
                                lp["gamma"], lp["beta"], lp["bn"], lp["act"])
        x = _to_nhwc(y, dims, lp["stride"])
    return jnp.transpose(x, (0, 3, 1, 2))                # NHWC -> NCHW


# --------------------------- pure-JAX reference ------------------------------

def dcgan_g_reference(params, x_nchw, match_kernel_numerics):
    """Pure-JAX reference. match_kernel_numerics=True rounds the conv inputs
    to bf16 (f32 accumulation) to mirror the kernel's MXU numerics; False is
    the exact f32 PyTorch-semantics model."""
    x = x_nchw
    for lp in params:
        wref = jnp.flip(lp["w"], (2, 3)).transpose(1, 0, 2, 3)   # OIHW
        p = K - 1 - lp["pad"]
        if match_kernel_numerics:
            lhs, rhs = x.astype(jnp.bfloat16), wref.astype(jnp.bfloat16)
            kwargs = dict(preferred_element_type=jnp.float32)
        else:
            lhs, rhs = x, wref
            kwargs = dict(precision=lax.Precision.HIGHEST)
        x = lax.conv_general_dilated(
            lhs, rhs, window_strides=(1, 1), padding=[(p, p), (p, p)],
            lhs_dilation=(lp["stride"], lp["stride"]),
            dimension_numbers=("NCHW", "OIHW", "NCHW"), **kwargs)
        if lp["bn"]:
            mean = jnp.mean(x, axis=(0, 2, 3), keepdims=True)
            var = jnp.mean((x - mean) ** 2, axis=(0, 2, 3), keepdims=True)
            x = (x - mean) * lax.rsqrt(var + BN_EPS)
            x = (x * lp["gamma"].reshape(1, -1, 1, 1)
                 + lp["beta"].reshape(1, -1, 1, 1))
        x = jnp.maximum(x, 0.0) if lp["act"] == "relu" else jnp.tanh(x)
    return x


# --------------------------- main --------------------------------------------

if __name__ == "__main__":
    key = jax.random.PRNGKey(0)
    key, xk = jax.random.split(key)
    params = init_params(key)

    # DCGAN generator input: latent z of shape (B, z_size, 1, 1), NCHW
    x = jax.random.normal(xk, (BATCH, Z_SIZE, 1, 1), jnp.float32)

    fwd = jax.jit(lambda z: dcgan_g_forward(params, z))
    out = jax.block_until_ready(fwd(x))
    assert out.shape == (BATCH, N_COLORS, IMAGE_SIZE, IMAGE_SIZE), out.shape

    # tight check vs. a reference using the same bf16-operand / f32-accum numerics
    ref_bf16 = jax.block_until_ready(dcgan_g_reference(params, x, True))
    np.testing.assert_allclose(np.asarray(out), np.asarray(ref_bf16),
                               rtol=1e-2, atol=1e-2)
    # sanity check vs. the exact f32 PyTorch-semantics model
    ref_f32 = jax.block_until_ready(dcgan_g_reference(params, x, False))
    np.testing.assert_allclose(np.asarray(out), np.asarray(ref_f32),
                               rtol=5e-2, atol=5e-2)

    print("KERNEL_OK")
</pallas_src>

<mosaic_0001>
module attributes {stable_mosaic.version = 11 : i64} {
  func.func @kernel(%arg0: i32, %arg1: memref<1x256x32xbf16, #tpu.memory_space<vmem>>, %arg2: memref<1x32x256xbf16, #tpu.memory_space<vmem>>, %arg3: memref<32x1xf32, #tpu.memory_space<vmem>>, %arg4: memref<32x1xf32, #tpu.memory_space<vmem>>, %arg5: memref<1x32x32xf32, #tpu.memory_space<vmem>>) attributes {dimension_semantics = [#tpu.dimension_semantics<arbitrary>], iteration_bounds = array<i64: 1>, scalar_prefetch = 0 : i64, scratch_operands = 0 : i64, tpu.core_type = #tpu.core_type<tc>, window_params = [{pipeline_mode = #tpu.pipeline_mode<synchronous>, transform_indices = @transform_0, window_bounds = array<i64: 1, 256, 32>}, {pipeline_mode = #tpu.pipeline_mode<synchronous>, transform_indices = @transform_1, window_bounds = array<i64: 1, 32, 256>}, {pipeline_mode = #tpu.pipeline_mode<synchronous>, transform_indices = @transform_2, window_bounds = array<i64: 32, 1>}, {pipeline_mode = #tpu.pipeline_mode<synchronous>, transform_indices = @transform_3, window_bounds = array<i64: 32, 1>}, {pipeline_mode = #tpu.pipeline_mode<synchronous>, transform_indices = @transform_4, window_bounds = array<i64: 1, 32, 32>}]} {
    %c0 = arith.constant 0 : index
    %c0_0 = arith.constant 0 : index
    %c0_1 = arith.constant 0 : index
    %0 = vector.load %arg2[%c0, %c0_0, %c0_1] : memref<1x32x256xbf16, #tpu.memory_space<vmem>>, vector<1x32x256xbf16>
    %1 = vector.shape_cast %0 : vector<1x32x256xbf16> to vector<32x256xbf16>
    %c0_2 = arith.constant 0 : index
    %c0_3 = arith.constant 0 : index
    %c0_4 = arith.constant 0 : index
    %2 = vector.load %arg1[%c0_2, %c0_3, %c0_4] : memref<1x256x32xbf16, #tpu.memory_space<vmem>>, vector<1x256x32xbf16>
    %3 = vector.shape_cast %2 : vector<1x256x32xbf16> to vector<256x32xbf16>
    %cst = arith.constant dense<0.000000e+00> : vector<32x32xf32>
    %4 = tpu.matmul %1, %3, %cst {dimension_numbers = #tpu.dot_dimension_numbers<[1], [0], [0], [1], [0, 0, 1, 1], [], []>} : vector<32x256xbf16>, vector<256x32xbf16>, vector<32x32xf32> -> vector<32x32xf32>
    %cst_5 = arith.constant dense<0.000000e+00> : vector<32xf32>
    %5 = vector.multi_reduction <add>, %4, %cst_5 [1] : vector<32x32xf32> to vector<32xf32>
    %6 = vector.shape_cast %5 : vector<32xf32> to vector<32x1xf32>
    %cst_6 = arith.constant 0.000000e+00 : f32
    %7 = vector.broadcast %cst_6 : f32 to vector<32x1xf32>
    %8 = arith.addf %7, %6 : vector<32x1xf32>
    %cst_7 = arith.constant 3.200000e+01 : f32
    %9 = vector.broadcast %cst_7 : f32 to vector<32x1xf32>
    %10 = arith.divf %8, %9 : vector<32x1xf32>
    %11 = vector.broadcast %10 : vector<32x1xf32> to vector<32x32xf32>
    %12 = arith.subf %4, %11 : vector<32x32xf32>
    %13 = vector.broadcast %10 : vector<32x1xf32> to vector<32x32xf32>
    %14 = arith.subf %4, %13 : vector<32x32xf32>
    %15 = arith.mulf %12, %14 : vector<32x32xf32>
    %cst_8 = arith.constant dense<0.000000e+00> : vector<32xf32>
    %16 = vector.multi_reduction <add>, %15, %cst_8 [1] : vector<32x32xf32> to vector<32xf32>
    %17 = vector.shape_cast %16 : vector<32xf32> to vector<32x1xf32>
    %cst_9 = arith.constant 0.000000e+00 : f32
    %18 = vector.broadcast %cst_9 : f32 to vector<32x1xf32>
    %19 = arith.addf %18, %17 : vector<32x1xf32>
    %cst_10 = arith.constant 3.200000e+01 : f32
    %20 = vector.broadcast %cst_10 : f32 to vector<32x1xf32>
    %21 = arith.divf %19, %20 : vector<32x1xf32>
    %cst_11 = arith.constant 9.99999974E-6 : f32
    %22 = vector.broadcast %cst_11 : f32 to vector<32x1xf32>
    %23 = arith.addf %21, %22 : vector<32x1xf32>
    %24 = math.rsqrt %23 : vector<32x1xf32>
    %c0_12 = arith.constant 0 : index
    %c0_13 = arith.constant 0 : index
    %25 = vector.load %arg3[%c0_12, %c0_13] : memref<32x1xf32, #tpu.memory_space<vmem>>, vector<32x1xf32>
    %26 = arith.mulf %24, %25 : vector<32x1xf32>
    %c0_14 = arith.constant 0 : index
    %c0_15 = arith.constant 0 : index
    %27 = vector.load %arg4[%c0_14, %c0_15] : memref<32x1xf32, #tpu.memory_space<vmem>>, vector<32x1xf32>
    %28 = arith.mulf %10, %26 : vector<32x1xf32>
    %29 = arith.subf %27, %28 : vector<32x1xf32>
    %30 = vector.broadcast %26 : vector<32x1xf32> to vector<32x32xf32>
    %31 = arith.mulf %4, %30 : vector<32x32xf32>
    %32 = vector.broadcast %29 : vector<32x1xf32> to vector<32x32xf32>
    %33 = arith.addf %31, %32 : vector<32x32xf32>
    %cst_16 = arith.constant 0.000000e+00 : f32
    %34 = vector.broadcast %cst_16 : f32 to vector<32x32xf32>
    %35 = arith.maximumf %33, %34 : vector<32x32xf32>
    %c0_17 = arith.constant 0 : index
    %c0_18 = arith.constant 0 : index
    %c0_19 = arith.constant 0 : index
    %36 = vector.load %arg5[%c0_17, %c0_18, %c0_19] : memref<1x32x32xf32, #tpu.memory_space<vmem>>, vector<1x32x32xf32>
    %37 = vector.shape_cast %36 : vector<1x32x32xf32> to vector<32x32xf32>
    %38 = vector.shape_cast %35 : vector<32x32xf32> to vector<1x32x32xf32>
    tpu.vector_store %arg5[%c0_17, %c0_18, %c0_19], %38 {strides = array<i32>} : memref<1x32x32xf32, #tpu.memory_space<vmem>>, vector<1x32x32xf32>,
    return
  }
  func.func @transform_0(%arg0: i32) -> (i32, i32, i32) {
    %c0_i32 = arith.constant 0 : i32
    %c0_i32_0 = arith.constant 0 : i32
    %c0_i32_1 = arith.constant 0 : i32
    %c0_i32_2 = arith.constant 0 : i32
    return %c0_i32, %c0_i32_0, %c0_i32_1 : i32, i32, i32
  }
  func.func @transform_1(%arg0: i32) -> (i32, i32, i32) {
    %c0_i32 = arith.constant 0 : i32
    %c0_i32_0 = arith.constant 0 : i32
    %c0_i32_1 = arith.constant 0 : i32
    %c0_i32_2 = arith.constant 0 : i32
    return %c0_i32, %c0_i32_0, %c0_i32_1 : i32, i32, i32
  }
  func.func @transform_2(%arg0: i32) -> (i32, i32) {
    %c0_i32 = arith.constant 0 : i32
    %c0_i32_0 = arith.constant 0 : i32
    %c0_i32_1 = arith.constant 0 : i32
    return %c0_i32, %c0_i32_0 : i32, i32
  }
  func.func @transform_3(%arg0: i32) -> (i32, i32) {
    %c0_i32 = arith.constant 0 : i32
    %c0_i32_0 = arith.constant 0 : i32
    %c0_i32_1 = arith.constant 0 : i32
    return %c0_i32, %c0_i32_0 : i32, i32
  }
  func.func @transform_4(%arg0: i32) -> (i32, i32, i32) {
    %c0_i32 = arith.constant 0 : i32
    %c0_i32_0 = arith.constant 0 : i32
    %c0_i32_1 = arith.constant 0 : i32
    %c0_i32_2 = arith.constant 0 : i32
    return %c0_i32, %c0_i32_0, %c0_i32_1 : i32, i32, i32
  }
}

module attributes {stable_mosaic.version = 11 : i64} {
  func.func @kernel(%arg0: i32, %arg1: memref<4x128x32xbf16, #tpu.memory_space<vmem>>, %arg2: memref<4x16x128xbf16, #tpu.memory_space<vmem>>, %arg3: memref<16x1xf32, #tpu.memory_space<vmem>>, %arg4: memref<16x1xf32, #tpu.memory_space<vmem>>, %arg5: memref<4x16x32xf32, #tpu.memory_space<vmem>>) attributes {dimension_semantics = [#tpu.dimension_semantics<arbitrary>], iteration_bounds = array<i64: 1>, scalar_prefetch = 0 : i64, scratch_operands = 0 : i64, tpu.core_type = #tpu.core_type<tc>, window_params = [{pipeline_mode = #tpu.pipeline_mode<synchronous>, transform_indices = @transform_0, window_bounds = array<i64: 4, 128, 32>}, {pipeline_mode = #tpu.pipeline_mode<synchronous>, transform_indices = @transform_1, window_bounds = array<i64: 4, 16, 128>}, {pipeline_mode = #tpu.pipeline_mode<synchronous>, transform_indices = @transform_2, window_bounds = array<i64: 16, 1>}, {pipeline_mode = #tpu.pipeline_mode<synchronous>, transform_indices = @transform_3, window_bounds = array<i64: 16, 1>}, {pipeline_mode = #tpu.pipeline_mode<synchronous>, transform_indices = @transform_4, window_bounds = array<i64: 4, 16, 32>}]} {
    %c0 = arith.constant 0 : index
    %c0_0 = arith.constant 0 : index
    %c0_1 = arith.constant 0 : index
    %0 = vector.load %arg2[%c0, %c0_0, %c0_1] : memref<4x16x128xbf16, #tpu.memory_space<vmem>>, vector<1x16x128xbf16>
    %1 = vector.shape_cast %0 : vector<1x16x128xbf16> to vector<16x128xbf16>
    %c0_2 = arith.constant 0 : index
    %c0_3 = arith.constant 0 : index
    %c0_4 = arith.constant 0 : index
    %2 = vector.load %arg1[%c0_2, %c0_3, %c0_4] : memref<4x128x32xbf16, #tpu.memory_space<vmem>>, vector<1x128x32xbf16>
    %3 = vector.shape_cast %2 : vector<1x128x32xbf16> to vector<128x32xbf16>
    %cst = arith.constant dense<0.000000e+00> : vector<16x32xf32>
    %4 = tpu.matmul %1, %3, %cst {dimension_numbers = #tpu.dot_dimension_numbers<[1], [0], [0], [1], [0, 0, 1, 1], [], []>} : vector<16x128xbf16>, vector<128x32xbf16>, vector<16x32xf32> -> vector<16x32xf32>
    %c1 = arith.constant 1 : index
    %c0_5 = arith.constant 0 : index
    %c0_6 = arith.constant 0 : index
    %5 = vector.load %arg2[%c1, %c0_5, %c0_6] : memref<4x16x128xbf16, #tpu.memory_space<vmem>>, vector<1x16x128xbf16>
    %6 = vector.shape_cast %5 : vector<1x16x128xbf16> to vector<16x128xbf16>
    %c1_7 = arith.constant 1 : index
    %c0_8 = arith.constant 0 : index
    %c0_9 = arith.constant 0 : index
    %7 = vector.load %arg1[%c1_7, %c0_8, %c0_9] : memref<4x128x32xbf16, #tpu.memory_space<vmem>>, vector<1x128x32xbf16>
    %8 = vector.shape_cast %7 : vector<1x128x32xbf16> to vector<128x32xbf16>
    %cst_10 = arith.constant dense<0.000000e+00> : vector<16x32xf32>
    %9 = tpu.matmul %6, %8, %cst_10 {dimension_numbers = #tpu.dot_dimension_numbers<[1], [0], [0], [1], [0, 0, 1, 1], [], []>} : vector<16x128xbf16>, vector<128x32xbf16>, vector<16x32xf32> -> vector<16x32xf32>
    %c2 = arith.constant 2 : index
    %c0_11 = arith.constant 0 : index
    %c0_12 = arith.constant 0 : index
    %10 = vector.load %arg2[%c2, %c0_11, %c0_12] : memref<4x16x128xbf16, #tpu.memory_space<vmem>>, vector<1x16x128xbf16>
    %11 = vector.shape_cast %10 : vector<1x16x128xbf16> to vector<16x128xbf16>
    %c2_13 = arith.constant 2 : index
    %c0_14 = arith.constant 0 : index
    %c0_15 = arith.constant 0 : index
    %12 = vector.load %arg1[%c2_13, %c0_14, %c0_15] : memref<4x128x32xbf16, #tpu.memory_space<vmem>>, vector<1x128x32xbf16>
    %13 = vector.shape_cast %12 : vector<1x128x32xbf16> to vector<128x32xbf16>
    %cst_16 = arith.constant dense<0.000000e+00> : vector<16x32xf32>
    %14 = tpu.matmul %11, %13, %cst_16 {dimension_numbers = #tpu.dot_dimension_numbers<[1], [0], [0], [1], [0, 0, 1, 1], [], []>} : vector<16x128xbf16>, vector<128x32xbf16>, vector<16x32xf32> -> vector<16x32xf32>
    %c3 = arith.constant 3 : index
    %c0_17 = arith.constant 0 : index
    %c0_18 = arith.constant 0 : index
    %15 = vector.load %arg2[%c3, %c0_17, %c0_18] : memref<4x16x128xbf16, #tpu.memory_space<vmem>>, vector<1x16x128xbf16>
    %16 = vector.shape_cast %15 : vector<1x16x128xbf16> to vector<16x128xbf16>
    %c3_19 = arith.constant 3 : index
    %c0_20 = arith.constant 0 : index
    %c0_21 = arith.constant 0 : index
    %17 = vector.load %arg1[%c3_19, %c0_20, %c0_21] : memref<4x128x32xbf16, #tpu.memory_space<vmem>>, vector<1x128x32xbf16>
    %18 = vector.shape_cast %17 : vector<1x128x32xbf16> to vector<128x32xbf16>
    %cst_22 = arith.constant dense<0.000000e+00> : vector<16x32xf32>
    %19 = tpu.matmul %16, %18, %cst_22 {dimension_numbers = #tpu.dot_dimension_numbers<[1], [0], [0], [1], [0, 0, 1, 1], [], []>} : vector<16x128xbf16>, vector<128x32xbf16>, vector<16x32xf32> -> vector<16x32xf32>
    %cst_23 = arith.constant dense<0.000000e+00> : vector<16xf32>
    %20 = vector.multi_reduction <add>, %4, %cst_23 [1] : vector<16x32xf32> to vector<16xf32>
    %21 = vector.shape_cast %20 : vector<16xf32> to vector<16x1xf32>
    %cst_24 = arith.constant 0.000000e+00 : f32
    %22 = vector.broadcast %cst_24 : f32 to vector<16x1xf32>
    %23 = arith.addf %22, %21 : vector<16x1xf32>
    %cst_25 = arith.constant dense<0.000000e+00> : vector<16xf32>
    %24 = vector.multi_reduction <add>, %9, %cst_25 [1] : vector<16x32xf32> to vector<16xf32>
    %25 = vector.shape_cast %24 : vector<16xf32> to vector<16x1xf32>
    %26 = arith.addf %23, %25 : vector<16x1xf32>
    %cst_26 = arith.constant dense<0.000000e+00> : vector<16xf32>
    %27 = vector.multi_reduction <add>, %14, %cst_26 [1] : vector<16x32xf32> to vector<16xf32>
    %28 = vector.shape_cast %27 : vector<16xf32> to vector<16x1xf32>
    %29 = arith.addf %26, %28 : vector<16x1xf32>
    %cst_27 = arith.constant dense<0.000000e+00> : vector<16xf32>
    %30 = vector.multi_reduction <add>, %19, %cst_27 [1] : vector<16x32xf32> to vector<16xf32>
    %31 = vector.shape_cast %30 : vector<16xf32> to vector<16x1xf32>
    %32 = arith.addf %29, %31 : vector<16x1xf32>
    %cst_28 = arith.constant 1.280000e+02 : f32
    %33 = vector.broadcast %cst_28 : f32 to vector<16x1xf32>
    %34 = arith.divf %32, %33 : vector<16x1xf32>
    %35 = vector.broadcast %34 : vector<16x1xf32> to vector<16x32xf32>
    %36 = arith.subf %4, %35 : vector<16x32xf32>
    %37 = vector.broadcast %34 : vector<16x1xf32> to vector<16x32xf32>
    %38 = arith.subf %4, %37 : vector<16x32xf32>
    %39 = arith.mulf %36, %38 : vector<16x32xf32>
    %cst_29 = arith.constant dense<0.000000e+00> : vector<16xf32>
    %40 = vector.multi_reduction <add>, %39, %cst_29 [1] : vector<16x32xf32> to vector<16xf32>
    %41 = vector.shape_cast %40 : vector<16xf32> to vector<16x1xf32>
    %cst_30 = arith.constant 0.000000e+00 : f32
    %42 = vector.broadcast %cst_30 : f32 to vector<16x1xf32>
    %43 = arith.addf %42, %41 : vector<16x1xf32>
    %44 = vector.broadcast %34 : vector<16x1xf32> to vector<16x32xf32>
    %45 = arith.subf %9, %44 : vector<16x32xf32>
    %46 = vector.broadcast %34 : vector<16x1xf32> to vector<16x32xf32>
    %47 = arith.subf %9, %46 : vector<16x32xf32>
    %48 = arith.mulf %45, %47 : vector<16x32xf32>
    %cst_31 = arith.constant dense<0.000000e+00> : vector<16xf32>
    %49 = vector.multi_reduction <add>, %48, %cst_31 [1] : vector<16x32xf32> to vector<16xf32>
    %50 = vector.shape_cast %49 : vector<16xf32> to vector<16x1xf32>
    %51 = arith.addf %43, %50 : vector<16x1xf32>
    %52 = vector.broadcast %34 : vector<16x1xf32> to vector<16x32xf32>
    %53 = arith.subf %14, %52 : vector<16x32xf32>
    %54 = vector.broadcast %34 : vector<16x1xf32> to vector<16x32xf32>
    %55 = arith.subf %14, %54 : vector<16x32xf32>
    %56 = arith.mulf %53, %55 : vector<16x32xf32>
    %cst_32 = arith.constant dense<0.000000e+00> : vector<16xf32>
    %57 = vector.multi_reduction <add>, %56, %cst_32 [1] : vector<16x32xf32> to vector<16xf32>
    %58 = vector.shape_cast %57 : vector<16xf32> to vector<16x1xf32>
    %59 = arith.addf %51, %58 : vector<16x1xf32>
    %60 = vector.broadcast %34 : vector<16x1xf32> to vector<16x32xf32>
    %61 = arith.subf %19, %60 : vector<16x32xf32>
    %62 = vector.broadcast %34 : vector<16x1xf32> to vector<16x32xf32>
    %63 = arith.subf %19, %62 : vector<16x32xf32>
    %64 = arith.mulf %61, %63 : vector<16x32xf32>
    %cst_33 = arith.constant dense<0.000000e+00> : vector<16xf32>
    %65 = vector.multi_reduction <add>, %64, %cst_33 [1] : vector<16x32xf32> to vector<16xf32>
    %66 = vector.shape_cast %65 : vector<16xf32> to vector<16x1xf32>
    %67 = arith.addf %59, %66 : vector<16x1xf32>
    %cst_34 = arith.constant 1.280000e+02 : f32
    %68 = vector.broadcast %cst_34 : f32 to vector<16x1xf32>
    %69 = arith.divf %67, %68 : vector<16x1xf32>
    %cst_35 = arith.constant 9.99999974E-6 : f32
    %70 = vector.broadcast %cst_35 : f32 to vector<16x1xf32>
    %71 = arith.addf %69, %70 : vector<16x1xf32>
    %72 = math.rsqrt %71 : vector<16x1xf32>
    %c0_36 = arith.constant 0 : index
    %c0_37 = arith.constant 0 : index
    %73 = vector.load %arg3[%c0_36, %c0_37] : memref<16x1xf32, #tpu.memory_space<vmem>>, vector<16x1xf32>
    %74 = arith.mulf %72, %73 : vector<16x1xf32>
    %c0_38 = arith.constant 0 : index
    %c0_39 = arith.constant 0 : index
    %75 = vector.load %arg4[%c0_38, %c0_39] : memref<16x1xf32, #tpu.memory_space<vmem>>, vector<16x1xf32>
    %76 = arith.mulf %34, %74 : vector<16x1xf32>
    %77 = arith.subf %75, %76 : vector<16x1xf32>
    %78 = vector.broadcast %74 : vector<16x1xf32> to vector<16x32xf32>
    %79 = arith.mulf %4, %78 : vector<16x32xf32>
    %80 = vector.broadcast %77 : vector<16x1xf32> to vector<16x32xf32>
    %81 = arith.addf %79, %80 : vector<16x32xf32>
    %82 = vector.broadcast %74 : vector<16x1xf32> to vector<16x32xf32>
    %83 = arith.mulf %9, %82 : vector<16x32xf32>
    %84 = vector.broadcast %77 : vector<16x1xf32> to vector<16x32xf32>
    %85 = arith.addf %83, %84 : vector<16x32xf32>
    %86 = vector.broadcast %74 : vector<16x1xf32> to vector<16x32xf32>
    %87 = arith.mulf %14, %86 : vector<16x32xf32>
    %88 = vector.broadcast %77 : vector<16x1xf32> to vector<16x32xf32>
    %89 = arith.addf %87, %88 : vector<16x32xf32>
    %90 = vector.broadcast %74 : vector<16x1xf32> to vector<16x32xf32>
    %91 = arith.mulf %19, %90 : vector<16x32xf32>
    %92 = vector.broadcast %77 : vector<16x1xf32> to vector<16x32xf32>
    %93 = arith.addf %91, %92 : vector<16x32xf32>
    %cst_40 = arith.constant 0.000000e+00 : f32
    %94 = vector.broadcast %cst_40 : f32 to vector<16x32xf32>
    %95 = arith.maximumf %81, %94 : vector<16x32xf32>
    %c0_41 = arith.constant 0 : index
    %c0_42 = arith.constant 0 : index
    %c0_43 = arith.constant 0 : index
    %96 = vector.load %arg5[%c0_41, %c0_42, %c0_43] : memref<4x16x32xf32, #tpu.memory_space<vmem>>, vector<1x16x32xf32>
    %97 = vector.shape_cast %96 : vector<1x16x32xf32> to vector<16x32xf32>
    %98 = vector.shape_cast %95 : vector<16x32xf32> to vector<1x16x32xf32>
    tpu.vector_store %arg5[%c0_41, %c0_42, %c0_43], %98 {strides = array<i32>} : memref<4x16x32xf32, #tpu.memory_space<vmem>>, vector<1x16x32xf32>,
    %cst_44 = arith.constant 0.000000e+00 : f32
    %99 = vector.broadcast %cst_44 : f32 to vector<16x32xf32>
    %100 = arith.maximumf %85, %99 : vector<16x32xf32>
    %c1_45 = arith.constant 1 : index
    %c0_46 = arith.constant 0 : index
    %c0_47 = arith.constant 0 : index
    %101 = vector.load %arg5[%c1_45, %c0_46, %c0_47] : memref<4x16x32xf32, #tpu.memory_space<vmem>>, vector<1x16x32xf32>
    %102 = vector.shape_cast %101 : vector<1x16x32xf32> to vector<16x32xf32>
    %103 = vector.shape_cast %100 : vector<16x32xf32> to vector<1x16x32xf32>
    tpu.vector_store %arg5[%c1_45, %c0_46, %c0_47], %103 {strides = array<i32>} : memref<4x16x32xf32, #tpu.memory_space<vmem>>, vector<1x16x32xf32>,
    %cst_48 = arith.constant 0.000000e+00 : f32
    %104 = vector.broadcast %cst_48 : f32 to vector<16x32xf32>
    %105 = arith.maximumf %89, %104 : vector<16x32xf32>
    %c2_49 = arith.constant 2 : index
    %c0_50 = arith.constant 0 : index
    %c0_51 = arith.constant 0 : index
    %106 = vector.load %arg5[%c2_49, %c0_50, %c0_51] : memref<4x16x32xf32, #tpu.memory_space<vmem>>, vector<1x16x32xf32>
    %107 = vector.shape_cast %106 : vector<1x16x32xf32> to vector<16x32xf32>
    %108 = vector.shape_cast %105 : vector<16x32xf32> to vector<1x16x32xf32>
    tpu.vector_store %arg5[%c2_49, %c0_50, %c0_51], %108 {strides = array<i32>} : memref<4x16x32xf32, #tpu.memory_space<vmem>>, vector<1x16x32xf32>,
    %cst_52 = arith.constant 0.000000e+00 : f32
    %109 = vector.broadcast %cst_52 : f32 to vector<16x32xf32>
    %110 = arith.maximumf %93, %109 : vector<16x32xf32>
    %c3_53 = arith.constant 3 : index
    %c0_54 = arith.constant 0 : index
    %c0_55 = arith.constant 0 : index
    %111 = vector.load %arg5[%c3_53, %c0_54, %c0_55] : memref<4x16x32xf32, #tpu.memory_space<vmem>>, vector<1x16x32xf32>
    %112 = vector.shape_cast %111 : vector<1x16x32xf32> to vector<16x32xf32>
    %113 = vector.shape_cast %110 : vector<16x32xf32> to vector<1x16x32xf32>
    tpu.vector_store %arg5[%c3_53, %c0_54, %c0_55], %113 {strides = array<i32>} : memref<4x16x32xf32, #tpu.memory_space<vmem>>, vector<1x16x32xf32>,
    return
  }
  func.func @transform_0(%arg0: i32) -> (i32, i32, i32) {
    %c0_i32 = arith.constant 0 : i32
    %c0_i32_0 = arith.constant 0 : i32
    %c0_i32_1 = arith.constant 0 : i32
    %c0_i32_2 = arith.constant 0 : i32
    return %c0_i32, %c0_i32_0, %c0_i32_1 : i32, i32, i32
  }
  func.func @transform_1(%arg0: i32) -> (i32, i32, i32) {
    %c0_i32 = arith.constant 0 : i32
    %c0_i32_0 = arith.constant 0 : i32
    %c0_i32_1 = arith.constant 0 : i32
    %c0_i32_2 = arith.constant 0 : i32
    return %c0_i32, %c0_i32_0, %c0_i32_1 : i32, i32, i32
  }
  func.func @transform_2(%arg0: i32) -> (i32, i32) {
    %c0_i32 = arith.constant 0 : i32
    %c0_i32_0 = arith.constant 0 : i32
    %c0_i32_1 = arith.constant 0 : i32
    return %c0_i32, %c0_i32_0 : i32, i32
  }
  func.func @transform_3(%arg0: i32) -> (i32, i32) {
    %c0_i32 = arith.constant 0 : i32
    %c0_i32_0 = arith.constant 0 : i32
    %c0_i32_1 = arith.constant 0 : i32
    return %c0_i32, %c0_i32_0 : i32, i32
  }
  func.func @transform_4(%arg0: i32) -> (i32, i32, i32) {
    %c0_i32 = arith.constant 0 : i32
    %c0_i32_0 = arith.constant 0 : i32
    %c0_i32_1 = arith.constant 0 : i32
    %c0_i32_2 = arith.constant 0 : i32
    return %c0_i32, %c0_i32_0, %c0_i32_1 : i32, i32, i32
  }
}

module attributes {stable_mosaic.version = 11 : i64} {
  func.func @kernel(%arg0: i32, %arg1: memref<4x64x128xbf16, #tpu.memory_space<vmem>>, %arg2: memref<4x8x64xbf16, #tpu.memory_space<vmem>>, %arg3: memref<8x1xf32, #tpu.memory_space<vmem>>, %arg4: memref<8x1xf32, #tpu.memory_space<vmem>>, %arg5: memref<4x8x128xf32, #tpu.memory_space<vmem>>) attributes {dimension_semantics = [#tpu.dimension_semantics<arbitrary>], iteration_bounds = array<i64: 1>, scalar_prefetch = 0 : i64, scratch_operands = 0 : i64, tpu.core_type = #tpu.core_type<tc>, window_params = [{pipeline_mode = #tpu.pipeline_mode<synchronous>, transform_indices = @transform_0, window_bounds = array<i64: 4, 64, 128>}, {pipeline_mode = #tpu.pipeline_mode<synchronous>, transform_indices = @transform_1, window_bounds = array<i64: 4, 8, 64>}, {pipeline_mode = #tpu.pipeline_mode<synchronous>, transform_indices = @transform_2, window_bounds = array<i64: 8, 1>}, {pipeline_mode = #tpu.pipeline_mode<synchronous>, transform_indices = @transform_3, window_bounds = array<i64: 8, 1>}, {pipeline_mode = #tpu.pipeline_mode<synchronous>, transform_indices = @transform_4, window_bounds = array<i64: 4, 8, 128>}]} {
    %c0 = arith.constant 0 : index
    %c0_0 = arith.constant 0 : index
    %c0_1 = arith.constant 0 : index
    %0 = vector.load %arg2[%c0, %c0_0, %c0_1] : memref<4x8x64xbf16, #tpu.memory_space<vmem>>, vector<1x8x64xbf16>
    %1 = vector.shape_cast %0 : vector<1x8x64xbf16> to vector<8x64xbf16>
    %c0_2 = arith.constant 0 : index
    %c0_3 = arith.constant 0 : index
    %c0_4 = arith.constant 0 : index
    %2 = vector.load %arg1[%c0_2, %c0_3, %c0_4] : memref<4x64x128xbf16, #tpu.memory_space<vmem>>, vector<1x64x128xbf16>
    %3 = vector.shape_cast %2 : vector<1x64x128xbf16> to vector<64x128xbf16>
    %cst = arith.constant dense<0.000000e+00> : vector<8x128xf32>
    %4 = tpu.matmul %1, %3, %cst {dimension_numbers = #tpu.dot_dimension_numbers<[1], [0], [0], [1], [0, 0, 1, 1], [], []>} : vector<8x64xbf16>, vector<64x128xbf16>, vector<8x128xf32> -> vector<8x128xf32>
    %c1 = arith.constant 1 : index
    %c0_5 = arith.constant 0 : index
    %c0_6 = arith.constant 0 : index
    %5 = vector.load %arg2[%c1, %c0_5, %c0_6] : memref<4x8x64xbf16, #tpu.memory_space<vmem>>, vector<1x8x64xbf16>
    %6 = vector.shape_cast %5 : vector<1x8x64xbf16> to vector<8x64xbf16>
    %c1_7 = arith.constant 1 : index
    %c0_8 = arith.constant 0 : index
    %c0_9 = arith.constant 0 : index
    %7 = vector.load %arg1[%c1_7, %c0_8, %c0_9] : memref<4x64x128xbf16, #tpu.memory_space<vmem>>, vector<1x64x128xbf16>
    %8 = vector.shape_cast %7 : vector<1x64x128xbf16> to vector<64x128xbf16>
    %cst_10 = arith.constant dense<0.000000e+00> : vector<8x128xf32>
    %9 = tpu.matmul %6, %8, %cst_10 {dimension_numbers = #tpu.dot_dimension_numbers<[1], [0], [0], [1], [0, 0, 1, 1], [], []>} : vector<8x64xbf16>, vector<64x128xbf16>, vector<8x128xf32> -> vector<8x128xf32>
    %c2 = arith.constant 2 : index
    %c0_11 = arith.constant 0 : index
    %c0_12 = arith.constant 0 : index
    %10 = vector.load %arg2[%c2, %c0_11, %c0_12] : memref<4x8x64xbf16, #tpu.memory_space<vmem>>, vector<1x8x64xbf16>
    %11 = vector.shape_cast %10 : vector<1x8x64xbf16> to vector<8x64xbf16>
    %c2_13 = arith.constant 2 : index
    %c0_14 = arith.constant 0 : index
    %c0_15 = arith.constant 0 : index
    %12 = vector.load %arg1[%c2_13, %c0_14, %c0_15] : memref<4x64x128xbf16, #tpu.memory_space<vmem>>, vector<1x64x128xbf16>
    %13 = vector.shape_cast %12 : vector<1x64x128xbf16> to vector<64x128xbf16>
    %cst_16 = arith.constant dense<0.000000e+00> : vector<8x128xf32>
    %14 = tpu.matmul %11, %13, %cst_16 {dimension_numbers = #tpu.dot_dimension_numbers<[1], [0], [0], [1], [0, 0, 1, 1], [], []>} : vector<8x64xbf16>, vector<64x128xbf16>, vector<8x128xf32> -> vector<8x128xf32>
    %c3 = arith.constant 3 : index
    %c0_17 = arith.constant 0 : index
    %c0_18 = arith.constant 0 : index
    %15 = vector.load %arg2[%c3, %c0_17, %c0_18] : memref<4x8x64xbf16, #tpu.memory_space<vmem>>, vector<1x8x64xbf16>
    %16 = vector.shape_cast %15 : vector<1x8x64xbf16> to vector<8x64xbf16>
    %c3_19 = arith.constant 3 : index
    %c0_20 = arith.constant 0 : index
    %c0_21 = arith.constant 0 : index
    %17 = vector.load %arg1[%c3_19, %c0_20, %c0_21] : memref<4x64x128xbf16, #tpu.memory_space<vmem>>, vector<1x64x128xbf16>
    %18 = vector.shape_cast %17 : vector<1x64x128xbf16> to vector<64x128xbf16>
    %cst_22 = arith.constant dense<0.000000e+00> : vector<8x128xf32>
    %19 = tpu.matmul %16, %18, %cst_22 {dimension_numbers = #tpu.dot_dimension_numbers<[1], [0], [0], [1], [0, 0, 1, 1], [], []>} : vector<8x64xbf16>, vector<64x128xbf16>, vector<8x128xf32> -> vector<8x128xf32>
    %cst_23 = arith.constant dense<0.000000e+00> : vector<8xf32>
    %20 = vector.multi_reduction <add>, %4, %cst_23 [1] : vector<8x128xf32> to vector<8xf32>
    %21 = vector.shape_cast %20 : vector<8xf32> to vector<8x1xf32>
    %cst_24 = arith.constant 0.000000e+00 : f32
    %22 = vector.broadcast %cst_24 : f32 to vector<8x1xf32>
    %23 = arith.addf %22, %21 : vector<8x1xf32>
    %cst_25 = arith.constant dense<0.000000e+00> : vector<8xf32>
    %24 = vector.multi_reduction <add>, %9, %cst_25 [1] : vector<8x128xf32> to vector<8xf32>
    %25 = vector.shape_cast %24 : vector<8xf32> to vector<8x1xf32>
    %26 = arith.addf %23, %25 : vector<8x1xf32>
    %cst_26 = arith.constant dense<0.000000e+00> : vector<8xf32>
    %27 = vector.multi_reduction <add>, %14, %cst_26 [1] : vector<8x128xf32> to vector<8xf32>
    %28 = vector.shape_cast %27 : vector<8xf32> to vector<8x1xf32>
    %29 = arith.addf %26, %28 : vector<8x1xf32>
    %cst_27 = arith.constant dense<0.000000e+00> : vector<8xf32>
    %30 = vector.multi_reduction <add>, %19, %cst_27 [1] : vector<8x128xf32> to vector<8xf32>
    %31 = vector.shape_cast %30 : vector<8xf32> to vector<8x1xf32>
    %32 = arith.addf %29, %31 : vector<8x1xf32>
    %cst_28 = arith.constant 5.120000e+02 : f32
    %33 = vector.broadcast %cst_28 : f32 to vector<8x1xf32>
    %34 = arith.divf %32, %33 : vector<8x1xf32>
    %35 = vector.broadcast %34 : vector<8x1xf32> to vector<8x128xf32>
    %36 = arith.subf %4, %35 : vector<8x128xf32>
    %37 = vector.broadcast %34 : vector<8x1xf32> to vector<8x128xf32>
    %38 = arith.subf %4, %37 : vector<8x128xf32>
    %39 = arith.mulf %36, %38 : vector<8x128xf32>
    %cst_29 = arith.constant dense<0.000000e+00> : vector<8xf32>
    %40 = vector.multi_reduction <add>, %39, %cst_29 [1] : vector<8x128xf32> to vector<8xf32>
    %41 = vector.shape_cast %40 : vector<8xf32> to vector<8x1xf32>
    %cst_30 = arith.constant 0.000000e+00 : f32
    %42 = vector.broadcast %cst_30 : f32 to vector<8x1xf32>
    %43 = arith.addf %42, %41 : vector<8x1xf32>
    %44 = vector.broadcast %34 : vector<8x1xf32> to vector<8x128xf32>
    %45 = arith.subf %9, %44 : vector<8x128xf32>
    %46 = vector.broadcast %34 : vector<8x1xf32> to vector<8x128xf32>
    %47 = arith.subf %9, %46 : vector<8x128xf32>
    %48 = arith.mulf %45, %47 : vector<8x128xf32>
    %cst_31 = arith.constant dense<0.000000e+00> : vector<8xf32>
    %49 = vector.multi_reduction <add>, %48, %cst_31 [1] : vector<8x128xf32> to vector<8xf32>
    %50 = vector.shape_cast %49 : vector<8xf32> to vector<8x1xf32>
    %51 = arith.addf %43, %50 : vector<8x1xf32>
    %52 = vector.broadcast %34 : vector<8x1xf32> to vector<8x128xf32>
    %53 = arith.subf %14, %52 : vector<8x128xf32>
    %54 = vector.broadcast %34 : vector<8x1xf32> to vector<8x128xf32>
    %55 = arith.subf %14, %54 : vector<8x128xf32>
    %56 = arith.mulf %53, %55 : vector<8x128xf32>
    %cst_32 = arith.constant dense<0.000000e+00> : vector<8xf32>
    %57 = vector.multi_reduction <add>, %56, %cst_32 [1] : vector<8x128xf32> to vector<8xf32>
    %58 = vector.shape_cast %57 : vector<8xf32> to vector<8x1xf32>
    %59 = arith.addf %51, %58 : vector<8x1xf32>
    %60 = vector.broadcast %34 : vector<8x1xf32> to vector<8x128xf32>
    %61 = arith.subf %19, %60 : vector<8x128xf32>
    %62 = vector.broadcast %34 : vector<8x1xf32> to vector<8x128xf32>
    %63 = arith.subf %19, %62 : vector<8x128xf32>
    %64 = arith.mulf %61, %63 : vector<8x128xf32>
    %cst_33 = arith.constant dense<0.000000e+00> : vector<8xf32>
    %65 = vector.multi_reduction <add>, %64, %cst_33 [1] : vector<8x128xf32> to vector<8xf32>
    %66 = vector.shape_cast %65 : vector<8xf32> to vector<8x1xf32>
    %67 = arith.addf %59, %66 : vector<8x1xf32>
    %cst_34 = arith.constant 5.120000e+02 : f32
    %68 = vector.broadcast %cst_34 : f32 to vector<8x1xf32>
    %69 = arith.divf %67, %68 : vector<8x1xf32>
    %cst_35 = arith.constant 9.99999974E-6 : f32
    %70 = vector.broadcast %cst_35 : f32 to vector<8x1xf32>
    %71 = arith.addf %69, %70 : vector<8x1xf32>
    %72 = math.rsqrt %71 : vector<8x1xf32>
    %c0_36 = arith.constant 0 : index
    %c0_37 = arith.constant 0 : index
    %73 = vector.load %arg3[%c0_36, %c0_37] : memref<8x1xf32, #tpu.memory_space<vmem>>, vector<8x1xf32>
    %74 = arith.mulf %72, %73 : vector<8x1xf32>
    %c0_38 = arith.constant 0 : index
    %c0_39 = arith.constant 0 : index
    %75 = vector.load %arg4[%c0_38, %c0_39] : memref<8x1xf32, #tpu.memory_space<vmem>>, vector<8x1xf32>
    %76 = arith.mulf %34, %74 : vector<8x1xf32>
    %77 = arith.subf %75, %76 : vector<8x1xf32>
    %78 = vector.broadcast %74 : vector<8x1xf32> to vector<8x128xf32>
    %79 = arith.mulf %4, %78 : vector<8x128xf32>
    %80 = vector.broadcast %77 : vector<8x1xf32> to vector<8x128xf32>
    %81 = arith.addf %79, %80 : vector<8x128xf32>
    %82 = vector.broadcast %74 : vector<8x1xf32> to vector<8x128xf32>
    %83 = arith.mulf %9, %82 : vector<8x128xf32>
    %84 = vector.broadcast %77 : vector<8x1xf32> to vector<8x128xf32>
    %85 = arith.addf %83, %84 : vector<8x128xf32>
    %86 = vector.broadcast %74 : vector<8x1xf32> to vector<8x128xf32>
    %87 = arith.mulf %14, %86 : vector<8x128xf32>
    %88 = vector.broadcast %77 : vector<8x1xf32> to vector<8x128xf32>
    %89 = arith.addf %87, %88 : vector<8x128xf32>
    %90 = vector.broadcast %74 : vector<8x1xf32> to vector<8x128xf32>
    %91 = arith.mulf %19, %90 : vector<8x128xf32>
    %92 = vector.broadcast %77 : vector<8x1xf32> to vector<8x128xf32>
    %93 = arith.addf %91, %92 : vector<8x128xf32>
    %cst_40 = arith.constant 0.000000e+00 : f32
    %94 = vector.broadcast %cst_40 : f32 to vector<8x128xf32>
    %95 = arith.maximumf %81, %94 : vector<8x128xf32>
    %c0_41 = arith.constant 0 : index
    %c0_42 = arith.constant 0 : index
    %c0_43 = arith.constant 0 : index
    %96 = vector.load %arg5[%c0_41, %c0_42, %c0_43] : memref<4x8x128xf32, #tpu.memory_space<vmem>>, vector<1x8x128xf32>
    %97 = vector.shape_cast %96 : vector<1x8x128xf32> to vector<8x128xf32>
    %98 = vector.shape_cast %95 : vector<8x128xf32> to vector<1x8x128xf32>
    tpu.vector_store %arg5[%c0_41, %c0_42, %c0_43], %98 {strides = array<i32>} : memref<4x8x128xf32, #tpu.memory_space<vmem>>, vector<1x8x128xf32>,
    %cst_44 = arith.constant 0.000000e+00 : f32
    %99 = vector.broadcast %cst_44 : f32 to vector<8x128xf32>
    %100 = arith.maximumf %85, %99 : vector<8x128xf32>
    %c1_45 = arith.constant 1 : index
    %c0_46 = arith.constant 0 : index
    %c0_47 = arith.constant 0 : index
    %101 = vector.load %arg5[%c1_45, %c0_46, %c0_47] : memref<4x8x128xf32, #tpu.memory_space<vmem>>, vector<1x8x128xf32>
    %102 = vector.shape_cast %101 : vector<1x8x128xf32> to vector<8x128xf32>
    %103 = vector.shape_cast %100 : vector<8x128xf32> to vector<1x8x128xf32>
    tpu.vector_store %arg5[%c1_45, %c0_46, %c0_47], %103 {strides = array<i32>} : memref<4x8x128xf32, #tpu.memory_space<vmem>>, vector<1x8x128xf32>,
    %cst_48 = arith.constant 0.000000e+00 : f32
    %104 = vector.broadcast %cst_48 : f32 to vector<8x128xf32>
    %105 = arith.maximumf %89, %104 : vector<8x128xf32>
    %c2_49 = arith.constant 2 : index
    %c0_50 = arith.constant 0 : index
    %c0_51 = arith.constant 0 : index
    %106 = vector.load %arg5[%c2_49, %c0_50, %c0_51] : memref<4x8x128xf32, #tpu.memory_space<vmem>>, vector<1x8x128xf32>
    %107 = vector.shape_cast %106 : vector<1x8x128xf32> to vector<8x128xf32>
    %108 = vector.shape_cast %105 : vector<8x128xf32> to vector<1x8x128xf32>
    tpu.vector_store %arg5[%c2_49, %c0_50, %c0_51], %108 {strides = array<i32>} : memref<4x8x128xf32, #tpu.memory_space<vmem>>, vector<1x8x128xf32>,
    %cst_52 = arith.constant 0.000000e+00 : f32
    %109 = vector.broadcast %cst_52 : f32 to vector<8x128xf32>
    %110 = arith.maximumf %93, %109 : vector<8x128xf32>
    %c3_53 = arith.constant 3 : index
    %c0_54 = arith.constant 0 : index
    %c0_55 = arith.constant 0 : index
    %111 = vector.load %arg5[%c3_53, %c0_54, %c0_55] : memref<4x8x128xf32, #tpu.memory_space<vmem>>, vector<1x8x128xf32>
    %112 = vector.shape_cast %111 : vector<1x8x128xf32> to vector<8x128xf32>
    %113 = vector.shape_cast %110 : vector<8x128xf32> to vector<1x8x128xf32>
    tpu.vector_store %arg5[%c3_53, %c0_54, %c0_55], %113 {strides = array<i32>} : memref<4x8x128xf32, #tpu.memory_space<vmem>>, vector<1x8x128xf32>,
    return
  }
  func.func @transform_0(%arg0: i32) -> (i32, i32, i32) {
    %c0_i32 = arith.constant 0 : i32
    %c0_i32_0 = arith.constant 0 : i32
    %c0_i32_1 = arith.constant 0 : i32
    %c0_i32_2 = arith.constant 0 : i32
    return %c0_i32, %c0_i32_0, %c0_i32_1 : i32, i32, i32
  }
  func.func @transform_1(%arg0: i32) -> (i32, i32, i32) {
    %c0_i32 = arith.constant 0 : i32
    %c0_i32_0 = arith.constant 0 : i32
    %c0_i32_1 = arith.constant 0 : i32
    %c0_i32_2 = arith.constant 0 : i32
    return %c0_i32, %c0_i32_0, %c0_i32_1 : i32, i32, i32
  }
  func.func @transform_2(%arg0: i32) -> (i32, i32) {
    %c0_i32 = arith.constant 0 : i32
    %c0_i32_0 = arith.constant 0 : i32
    %c0_i32_1 = arith.constant 0 : i32
    return %c0_i32, %c0_i32_0 : i32, i32
  }
  func.func @transform_3(%arg0: i32) -> (i32, i32) {
    %c0_i32 = arith.constant 0 : i32
    %c0_i32_0 = arith.constant 0 : i32
    %c0_i32_1 = arith.constant 0 : i32
    return %c0_i32, %c0_i32_0 : i32, i32
  }
  func.func @transform_4(%arg0: i32) -> (i32, i32, i32) {
    %c0_i32 = arith.constant 0 : i32
    %c0_i32_0 = arith.constant 0 : i32
    %c0_i32_1 = arith.constant 0 : i32
    %c0_i32_2 = arith.constant 0 : i32
    return %c0_i32, %c0_i32_0, %c0_i32_1 : i32, i32, i32
  }
}

module attributes {stable_mosaic.version = 11 : i64} {
  func.func @kernel(%arg0: i32, %arg1: memref<4x32x512xbf16, #tpu.memory_space<vmem>>, %arg2: memref<4x3x32xbf16, #tpu.memory_space<vmem>>, %arg3: memref<4x3x512xf32, #tpu.memory_space<vmem>>) attributes {dimension_semantics = [#tpu.dimension_semantics<arbitrary>], iteration_bounds = array<i64: 1>, scalar_prefetch = 0 : i64, scratch_operands = 0 : i64, tpu.core_type = #tpu.core_type<tc>, window_params = [{pipeline_mode = #tpu.pipeline_mode<synchronous>, transform_indices = @transform_0, window_bounds = array<i64: 4, 32, 512>}, {pipeline_mode = #tpu.pipeline_mode<synchronous>, transform_indices = @transform_1, window_bounds = array<i64: 4, 3, 32>}, {pipeline_mode = #tpu.pipeline_mode<synchronous>, transform_indices = @transform_2, window_bounds = array<i64: 4, 3, 512>}]} {
    %c0 = arith.constant 0 : index
    %c0_0 = arith.constant 0 : index
    %c0_1 = arith.constant 0 : index
    %0 = vector.load %arg2[%c0, %c0_0, %c0_1] : memref<4x3x32xbf16, #tpu.memory_space<vmem>>, vector<1x3x32xbf16>
    %1 = vector.shape_cast %0 : vector<1x3x32xbf16> to vector<3x32xbf16>
    %c0_2 = arith.constant 0 : index
    %c0_3 = arith.constant 0 : index
    %c0_4 = arith.constant 0 : index
    %2 = vector.load %arg1[%c0_2, %c0_3, %c0_4] : memref<4x32x512xbf16, #tpu.memory_space<vmem>>, vector<1x32x512xbf16>
    %3 = vector.shape_cast %2 : vector<1x32x512xbf16> to vector<32x512xbf16>
    %cst = arith.constant dense<0.000000e+00> : vector<3x512xf32>
    %4 = tpu.matmul %1, %3, %cst {dimension_numbers = #tpu.dot_dimension_numbers<[1], [0], [0], [1], [0, 0, 1, 1], [], []>} : vector<3x32xbf16>, vector<32x512xbf16>, vector<3x512xf32> -> vector<3x512xf32>
    %c1 = arith.constant 1 : index
    %c0_5 = arith.constant 0 : index
    %c0_6 = arith.constant 0 : index
    %5 = vector.load %arg2[%c1, %c0_5, %c0_6] : memref<4x3x32xbf16, #tpu.memory_space<vmem>>, vector<1x3x32xbf16>
    %6 = vector.shape_cast %5 : vector<1x3x32xbf16> to vector<3x32xbf16>
    %c1_7 = arith.constant 1 : index
    %c0_8 = arith.constant 0 : index
    %c0_9 = arith.constant 0 : index
    %7 = vector.load %arg1[%c1_7, %c0_8, %c0_9] : memref<4x32x512xbf16, #tpu.memory_space<vmem>>, vector<1x32x512xbf16>
    %8 = vector.shape_cast %7 : vector<1x32x512xbf16> to vector<32x512xbf16>
    %cst_10 = arith.constant dense<0.000000e+00> : vector<3x512xf32>
    %9 = tpu.matmul %6, %8, %cst_10 {dimension_numbers = #tpu.dot_dimension_numbers<[1], [0], [0], [1], [0, 0, 1, 1], [], []>} : vector<3x32xbf16>, vector<32x512xbf16>, vector<3x512xf32> -> vector<3x512xf32>
    %c2 = arith.constant 2 : index
    %c0_11 = arith.constant 0 : index
    %c0_12 = arith.constant 0 : index
    %10 = vector.load %arg2[%c2, %c0_11, %c0_12] : memref<4x3x32xbf16, #tpu.memory_space<vmem>>, vector<1x3x32xbf16>
    %11 = vector.shape_cast %10 : vector<1x3x32xbf16> to vector<3x32xbf16>
    %c2_13 = arith.constant 2 : index
    %c0_14 = arith.constant 0 : index
    %c0_15 = arith.constant 0 : index
    %12 = vector.load %arg1[%c2_13, %c0_14, %c0_15] : memref<4x32x512xbf16, #tpu.memory_space<vmem>>, vector<1x32x512xbf16>
    %13 = vector.shape_cast %12 : vector<1x32x512xbf16> to vector<32x512xbf16>
    %cst_16 = arith.constant dense<0.000000e+00> : vector<3x512xf32>
    %14 = tpu.matmul %11, %13, %cst_16 {dimension_numbers = #tpu.dot_dimension_numbers<[1], [0], [0], [1], [0, 0, 1, 1], [], []>} : vector<3x32xbf16>, vector<32x512xbf16>, vector<3x512xf32> -> vector<3x512xf32>
    %c3 = arith.constant 3 : index
    %c0_17 = arith.constant 0 : index
    %c0_18 = arith.constant 0 : index
    %15 = vector.load %arg2[%c3, %c0_17, %c0_18] : memref<4x3x32xbf16, #tpu.memory_space<vmem>>, vector<1x3x32xbf16>
    %16 = vector.shape_cast %15 : vector<1x3x32xbf16> to vector<3x32xbf16>
    %c3_19 = arith.constant 3 : index
    %c0_20 = arith.constant 0 : index
    %c0_21 = arith.constant 0 : index
    %17 = vector.load %arg1[%c3_19, %c0_20, %c0_21] : memref<4x32x512xbf16, #tpu.memory_space<vmem>>, vector<1x32x512xbf16>
    %18 = vector.shape_cast %17 : vector<1x32x512xbf16> to vector<32x512xbf16>
    %cst_22 = arith.constant dense<0.000000e+00> : vector<3x512xf32>
    %19 = tpu.matmul %16, %18, %cst_22 {dimension_numbers = #tpu.dot_dimension_numbers<[1], [0], [0], [1], [0, 0, 1, 1], [], []>} : vector<3x32xbf16>, vector<32x512xbf16>, vector<3x512xf32> -> vector<3x512xf32>
    %20 = math.tanh %4 : vector<3x512xf32>
    %c0_23 = arith.constant 0 : index
    %c0_24 = arith.constant 0 : index
    %c0_25 = arith.constant 0 : index
    %21 = vector.load %arg3[%c0_23, %c0_24, %c0_25] : memref<4x3x512xf32, #tpu.memory_space<vmem>>, vector<1x3x512xf32>
    %22 = vector.shape_cast %21 : vector<1x3x512xf32> to vector<3x512xf32>
    %23 = vector.shape_cast %20 : vector<3x512xf32> to vector<1x3x512xf32>
    tpu.vector_store %arg3[%c0_23, %c0_24, %c0_25], %23 {strides = array<i32>} : memref<4x3x512xf32, #tpu.memory_space<vmem>>, vector<1x3x512xf32>,
    %24 = math.tanh %9 : vector<3x512xf32>
    %c1_26 = arith.constant 1 : index
    %c0_27 = arith.constant 0 : index
    %c0_28 = arith.constant 0 : index
    %25 = vector.load %arg3[%c1_26, %c0_27, %c0_28] : memref<4x3x512xf32, #tpu.memory_space<vmem>>, vector<1x3x512xf32>
    %26 = vector.shape_cast %25 : vector<1x3x512xf32> to vector<3x512xf32>
    %27 = vector.shape_cast %24 : vector<3x512xf32> to vector<1x3x512xf32>
    tpu.vector_store %arg3[%c1_26, %c0_27, %c0_28], %27 {strides = array<i32>} : memref<4x3x512xf32, #tpu.memory_space<vmem>>, vector<1x3x512xf32>,
    %28 = math.tanh %14 : vector<3x512xf32>
    %c2_29 = arith.constant 2 : index
    %c0_30 = arith.constant 0 : index
    %c0_31 = arith.constant 0 : index
    %29 = vector.load %arg3[%c2_29, %c0_30, %c0_31] : memref<4x3x512xf32, #tpu.memory_space<vmem>>, vector<1x3x512xf32>
    %30 = vector.shape_cast %29 : vector<1x3x512xf32> to vector<3x512xf32>
    %31 = vector.shape_cast %28 : vector<3x512xf32> to vector<1x3x512xf32>
    tpu.vector_store %arg3[%c2_29, %c0_30, %c0_31], %31 {strides = array<i32>} : memref<4x3x512xf32, #tpu.memory_space<vmem>>, vector<1x3x512xf32>,
    %32 = math.tanh %19 : vector<3x512xf32>
    %c3_32 = arith.constant 3 : index
    %c0_33 = arith.constant 0 : index
    %c0_34 = arith.constant 0 : index
    %33 = vector.load %arg3[%c3_32, %c0_33, %c0_34] : memref<4x3x512xf32, #tpu.memory_space<vmem>>, vector<1x3x512xf32>
    %34 = vector.shape_cast %33 : vector<1x3x512xf32> to vector<3x512xf32>
    %35 = vector.shape_cast %32 : vector<3x512xf32> to vector<1x3x512xf32>
    tpu.vector_store %arg3[%c3_32, %c0_33, %c0_34], %35 {strides = array<i32>} : memref<4x3x512xf32, #tpu.memory_space<vmem>>, vector<1x3x512xf32>,
    return
  }
  func.func @transform_0(%arg0: i32) -> (i32, i32, i32) {
    %c0_i32 = arith.constant 0 : i32
    %c0_i32_0 = arith.constant 0 : i32
    %c0_i32_1 = arith.constant 0 : i32
    %c0_i32_2 = arith.constant 0 : i32
    return %c0_i32, %c0_i32_0, %c0_i32_1 : i32, i32, i32
  }
  func.func @transform_1(%arg0: i32) -> (i32, i32, i32) {
    %c0_i32 = arith.constant 0 : i32
    %c0_i32_0 = arith.constant 0 : i32
    %c0_i32_1 = arith.constant 0 : i32
    %c0_i32_2 = arith.constant 0 : i32
    return %c0_i32, %c0_i32_0, %c0_i32_1 : i32, i32, i32
  }
  func.func @transform_2(%arg0: i32) -> (i32, i32, i32) {
    %c0_i32 = arith.constant 0 : i32
    %c0_i32_0 = arith.constant 0 : i32
    %c0_i32_1 = arith.constant 0 : i32
    %c0_i32_2 = arith.constant 0 : i32
    return %c0_i32, %c0_i32_0, %c0_i32_1 : i32, i32, i32
  }
}

</mosaic_0001>

<llo_original>
// kernel: _lambda_.4
$region0: #{_lambda_.4}
  #allocation0 [shape = 'u32[]', space=smem, size = 0x4, offset = 0x4, fixed_abs, tag = 'smem constant byte address 0x4 - core index']
  #allocation1 [shape = 'u32[144,128]{1,0:T(1,128)}', space=vmem, size = 0x12000, scoped, tag = 'internal scratch']
  %s0 = inlined_call_operand.vmem [shape: bf16[1,256,32], index: 0, kind: input, shape index: {}]
  %s1 = inlined_call_operand.hbm [shape: bf16[1,32,256], index: 1, kind: input, shape index: {}]
  %s2 = inlined_call_operand.vmem [shape: f32[32,1], index: 2, kind: input, shape index: {}]
  %s3 = inlined_call_operand.vmem [shape: f32[32,1], index: 3, kind: input, shape index: {}]
  %s4 = inlined_call_operand.vmem [shape: f32[1,32,32], index: 4, kind: output, shape index: {}]
  %s5 = sld [smem:[#allocation0]]
  $region30: #{_lambda_.4} parent=0
    _
  %s7 = ssub.s32 1, %s5
  %s8 = scalar_select 0, %s7, %s5
  $region1: #{_lambda_.4} parent=0
    #allocation2 [shape = 'u8[16384]{0}', space=vmem, size = 0x4000, scoped, tag = 'input window, operand 1, single buffered']
    #allocation3 [shape = 's32[1]{0}', space=sflag, size = 0x4, scoped, tag = 'scoped memory for _lambda_.4']
    %9 = vsyncpa [#allocation3], 0
    // Predicated region
    $region2: #{_lambda_.4} parent=1 // pred_check
      _
    $region3: #{_lambda_.4} parent=1 // pred_check_branch
      %11 = sbr.rel (0) target = $region5
    $region4: #{_lambda_.4} parent=1 // pred_region
      _
    $region5: #{_lambda_.4} parent=1 // pred_fallthru
      _
    // Predicated region
    $region6: #{_lambda_.4} parent=1 // pred_check
      _
    $region7: #{_lambda_.4} parent=1 // pred_check_branch
      %13 = sbr.rel (0) target = $region9
    $region8: #{_lambda_.4} parent=1 // pred_region
      %s15 = ssub.s32 512, 512
      %16 = vsyncadd [#allocation3], %s15
      %s17 = sshll.u32 [#allocation2], 4
      %s18 = int_to_ptr.vmem [resolvable:$true] %s17
      %23 = dma.hbm_to_vmem [thread:$0]  %s1, 512, %s18, [#allocation3], 128, 128, 8
    $region9: #{_lambda_.4} parent=1 // pred_fallthru
      _
    // Predicated region
    $region10: #{_lambda_.4} parent=1 // pred_check
      _
    $region11: #{_lambda_.4} parent=1 // pred_check_branch
      %25 = sbr.rel (0) target = $region13
    $region12: #{_lambda_.4} parent=1 // pred_region
      _
    $region13: #{_lambda_.4} parent=1 // pred_fallthru
      _
    // Predicated region
    $region14: #{_lambda_.4} parent=1 // pred_check
      _
    $region15: #{_lambda_.4} parent=1 // pred_check_branch
      %27 = sbr.rel (0) target = $region17
    $region16: #{_lambda_.4} parent=1 // pred_region
      _
    $region17: #{_lambda_.4} parent=1 // pred_fallthru
      _
    // Predicated region
    $region18: #{_lambda_.4} parent=1 // pred_check
      _
    $region19: #{_lambda_.4} parent=1 // pred_check_branch
      %29 = sbr.rel (0) target = $region21
    $region20: #{_lambda_.4} parent=1 // pred_region
      %30 = dma.done [#allocation3], 512
    $region21: #{_lambda_.4} parent=1 // pred_fallthru
      _
    %v32 = vld [vmem:[#allocation2] sm:$0xff]
    %v33 = vld [vmem:[#allocation2 + $0x8] sm:$0xff]
    %v34 = vld [vmem:[#allocation2 + $0x10] sm:$0xff]
    %v35 = vld [vmem:[#allocation2 + $0x18] sm:$0xff]
    %v36 = vld [vmem:[%s0] sm:$0xf]
    %v37 = vld [vmem:[%s0 + $0x4] sm:$0xf]
    %v38 = vld [vmem:[%s0 + $0x8] sm:$0xf]
    %v39 = vld [vmem:[%s0 + $0xc] sm:$0xf]
    %v40 = vld [vmem:[%s0 + $0x10] sm:$0xf]
    %v41 = vld [vmem:[%s0 + $0x14] sm:$0xf]
    %v42 = vld [vmem:[%s0 + $0x18] sm:$0xf]
    %v43 = vld [vmem:[%s0 + $0x1c] sm:$0xf]
    %v44 = vld [vmem:[%s0 + $0x20] sm:$0xf]
    %v45 = vld [vmem:[%s0 + $0x24] sm:$0xf]
    %v46 = vld [vmem:[%s0 + $0x28] sm:$0xf]
    %v47 = vld [vmem:[%s0 + $0x2c] sm:$0xf]
    %v48 = vld [vmem:[%s0 + $0x30] sm:$0xf]
    %v49 = vld [vmem:[%s0 + $0x34] sm:$0xf]
    %v50 = vld [vmem:[%s0 + $0x38] sm:$0xf]
    %v51 = vld [vmem:[%s0 + $0x3c] sm:$0xf]
    %v52 = vld [vmem:[%s0 + $0x40] sm:$0xf]
    %v53 = vld [vmem:[%s0 + $0x44] sm:$0xf]
    %v54 = vld [vmem:[%s0 + $0x48] sm:$0xf]
    %v55 = vld [vmem:[%s0 + $0x4c] sm:$0xf]
    %v56 = vld [vmem:[%s0 + $0x50] sm:$0xf]
    %v57 = vld [vmem:[%s0 + $0x54] sm:$0xf]
    %v58 = vld [vmem:[%s0 + $0x58] sm:$0xf]
    %v59 = vld [vmem:[%s0 + $0x5c] sm:$0xf]
    %v60 = vld [vmem:[%s0 + $0x60] sm:$0xf]
    %v61 = vld [vmem:[%s0 + $0x64] sm:$0xf]
    %v62 = vld [vmem:[%s0 + $0x68] sm:$0xf]
    %v63 = vld [vmem:[%s0 + $0x6c] sm:$0xf]
    %v64 = vld [vmem:[%s0 + $0x70] sm:$0xf]
    %v65 = vld [vmem:[%s0 + $0x74] sm:$0xf]
    %v66 = vld [vmem:[%s0 + $0x78] sm:$0xf]
    %v67 = vld [vmem:[%s0 + $0x7c] sm:$0xf]
    %v72 = vunpack.c.l.b16 %v32
    %v73 = vunpack.c.h.b16 %v32
    %v74 = vunpack.c.l.b16 %v33
    %v75 = vunpack.c.h.b16 %v33
    %v76 = vunpack.c.l.b16 %v34
    %v77 = vunpack.c.h.b16 %v34
    %v78 = vunpack.c.l.b16 %v35
    %v79 = vunpack.c.h.b16 %v35
    %v80 = vpack.c.b16 %v74, %v72
    %v81 = vpack.c.b16 %v75, %v73
    %v82 = vpack.c.b16 %v78, %v76
    %v83 = vpack.c.b16 %v79, %v77
    %v120 = vunpack.c.l.b16 %v36
    %v121 = vunpack.c.l.b16 %v37
    %v122 = vunpack.c.l.b16 %v38
    %v123 = vunpack.c.l.b16 %v39
    %v124 = vunpack.c.l.b16 %v40
    %v125 = vunpack.c.l.b16 %v41
    %v126 = vunpack.c.l.b16 %v42
    %v127 = vunpack.c.l.b16 %v43
    %v128 = vunpack.c.l.b16 %v44
    %v129 = vunpack.c.l.b16 %v45
    %v130 = vunpack.c.l.b16 %v46
    %v131 = vunpack.c.l.b16 %v47
    %v132 = vunpack.c.l.b16 %v48
    %v133 = vunpack.c.l.b16 %v49
    %v134 = vunpack.c.l.b16 %v50
    %v135 = vunpack.c.l.b16 %v51
    %v136 = vunpack.c.l.b16 %v52
    %v137 = vunpack.c.l.b16 %v53
    %v138 = vunpack.c.l.b16 %v54
    %v139 = vunpack.c.l.b16 %v55
    %v140 = vunpack.c.l.b16 %v56
    %v141 = vunpack.c.l.b16 %v57
    %v142 = vunpack.c.l.b16 %v58
    %v143 = vunpack.c.l.b16 %v59
    %v144 = vunpack.c.l.b16 %v60
    %v145 = vunpack.c.l.b16 %v61
    %v146 = vunpack.c.l.b16 %v62
    %v147 = vunpack.c.l.b16 %v63
    %v148 = vunpack.c.l.b16 %v64
    %v149 = vunpack.c.l.b16 %v65
    %v150 = vunpack.c.l.b16 %v66
    %v151 = vunpack.c.l.b16 %v67
    %v152 = vpack.c.b16 %v121, %v120
    %v153 = vpack.c.b16 %v123, %v122
    %v154 = vpack.c.b16 %v125, %v124
    %v155 = vpack.c.b16 %v127, %v126
    %v156 = vpack.c.b16 %v129, %v128
    %v157 = vpack.c.b16 %v131, %v130
    %v158 = vpack.c.b16 %v133, %v132
    %v159 = vpack.c.b16 %v135, %v134
    %v160 = vpack.c.b16 %v137, %v136
    %v161 = vpack.c.b16 %v139, %v138
    %v162 = vpack.c.b16 %v141, %v140
    %v163 = vpack.c.b16 %v143, %v142
    %v164 = vpack.c.b16 %v145, %v144
    %v165 = vpack.c.b16 %v147, %v146
    %v166 = vpack.c.b16 %v149, %v148
    %v167 = vpack.c.b16 %v151, %v150
    %184 = vmatprep.subr.bf16.mxu0 0
    %185 = vmatpush1.bf16.msra.mxu0 %v159
    %186 = vmatprep.subr.bf16.mxu0 0
    %187 = vmatpush1.bf16.msra.mxu0 %v158
    %188 = vmatprep.subr.bf16.mxu0 0
    %189 = vmatpush1.bf16.msra.mxu0 %v157
    %190 = vmatprep.subr.bf16.mxu0 0
    %191 = vmatpush1.bf16.msra.mxu0 %v156
    %192 = vmatprep.subr.bf16.mxu0 0
    %193 = vmatpush1.bf16.msra.mxu0 %v155
    %194 = vmatprep.subr.bf16.mxu0 0
    %195 = vmatpush1.bf16.msra.mxu0 %v154
    %196 = vmatprep.subr.bf16.mxu0 0
    %197 = vmatpush1.bf16.msra.mxu0 %v153
    %198 = vmatprep.subr.bf16.mxu0 0
    %199 = vmatpush1.bf16.msra.mxu0 %v152
    %200 = vmatprep.subr.bf16.mxu0 0
    %201 = vmatpush2.bf16.msra.mxu0 %v167
    %202 = vmatprep.subr.bf16.mxu0 0
    %203 = vmatpush2.bf16.msra.mxu0 %v166
    %204 = vmatprep.subr.bf16.mxu0 0
    %205 = vmatpush2.bf16.msra.mxu0 %v165
    %206 = vmatprep.subr.bf16.mxu0 0
    %207 = vmatpush2.bf16.msra.mxu0 %v164
    %208 = vmatprep.subr.bf16.mxu0 0
    %209 = vmatpush2.bf16.msra.mxu0 %v163
    %210 = vmatprep.subr.bf16.mxu0 0
    %211 = vmatpush2.bf16.msra.mxu0 %v162
    %212 = vmatprep.subr.bf16.mxu0 0
    %213 = vmatpush2.bf16.msra.mxu0 %v161
    %214 = vmatprep.subr.bf16.mxu0 0
    %215 = vmatpush2.bf16.msra.mxu0 %v160
    %216 = vmatprep.mubr.bf16.mxu0 %v81
    %217 = vmatmul.mubr.bf16.gmra.mxu0 %v80
    %v218 = vpop.f32.mrf.mxu0
    %v219 = vadd.f32 0.0, %v218
    %v220 = vpop.f32.mrf.mxu0
    %v221 = vpop.f32.mrf.mxu0
    %v222 = vadd.f32 0.0, %v221
    %v223 = vpop.f32.mrf.mxu0
    %224 = vmatprep.mubr.bf16.mxu0 %v83
    %225 = vmatmul.mubr.bf16.gmra.mxu0 %v82
    %v226 = vpop.f32.mrf.mxu0
    %v227 = vadd.f32 0.0, %v226
    %v228 = vpop.f32.mrf.mxu0
    %v229 = vpop.f32.mrf.mxu0
    %v230 = vadd.f32 0.0, %v229
    %v231 = vpop.f32.mrf.mxu0
    %232 = vdwg.mxu0
    %vm233 = vcmask 261120
    %v234 = vsel %vm233, %v219, 0.0
    %235 = vadd.xlane.f32.xlu0 %v234
    %v236 = vpop.xlane.xlu0 %235
    %v237 = vsel %vm233, %v222, 0.0
    %238 = vadd.xlane.f32.xlu0 %v237
    %v239 = vpop.xlane.xlu0 %238
    %v240 = vsel %vm233, %v227, 0.0
    %241 = vadd.xlane.f32.xlu0 %v240
    %v242 = vpop.xlane.xlu0 %241
    %v243 = vsel %vm233, %v230, 0.0
    %244 = vadd.xlane.f32.xlu0 %v243
    %v245 = vpop.xlane.xlu0 %244
    %v246 = vadd.f32 %v236, 0.0
    %v247 = vadd.f32 %v239, 0.0
    %v248 = vadd.f32 %v242, 0.0
    %v249 = vadd.f32 %v245, 0.0
    %v250 = vrcp.pop 32.0
    %v251 = vmul.f32 %v246, %v250
    %v252 = vmul.f32 %v247, %v250
    %v253 = vmul.f32 %v248, %v250
    %v254 = vmul.f32 %v249, %v250
    %v255 = vsub.f32 %v219, %v251
    %v256 = vsub.f32 %v222, %v252
    %v257 = vsub.f32 %v227, %v253
    %v258 = vsub.f32 %v230, %v254
    %v259 = vmul.f32 %v255, %v255
    %v260 = vmul.f32 %v256, %v256
    %v261 = vmul.f32 %v257, %v257
    %v262 = vmul.f32 %v258, %v258
    %v263 = vsel %vm233, %v259, 0.0
    %264 = vadd.xlane.f32.xlu0 %v263
    %v265 = vpop.xlane.xlu0 %264
    %v266 = vsel %vm233, %v260, 0.0
    %267 = vadd.xlane.f32.xlu0 %v266
    %v268 = vpop.xlane.xlu0 %267
    %v269 = vsel %vm233, %v261, 0.0
    %270 = vadd.xlane.f32.xlu0 %v269
    %v271 = vpop.xlane.xlu0 %270
    %v272 = vsel %vm233, %v262, 0.0
    %273 = vadd.xlane.f32.xlu0 %v272
    %v274 = vpop.xlane.xlu0 %273
    %v275 = vadd.f32 %v265, 0.0
    %v276 = vadd.f32 %v268, 0.0
    %v277 = vadd.f32 %v271, 0.0
    %v278 = vadd.f32 %v274, 0.0
    %v279 = vmul.f32 %v275, %v250
    %v280 = vmul.f32 %v276, %v250
    %v281 = vmul.f32 %v277, %v250
    %v282 = vmul.f32 %v278, %v250
    %v283 = vadd.f32 %v279, 1e-05
    %v284 = vadd.f32 %v280, 1e-05
    %v285 = vadd.f32 %v281, 1e-05
    %v286 = vadd.f32 %v282, 1e-05
    %v287 = vrsqrt.pop %v283
    %v288 = vrsqrt.pop %v284
    %v289 = vrsqrt.pop %v285
    %v290 = vrsqrt.pop %v286
    %v291 = vld [vmem:[%s2] sm:$0xff]
    %v292 = vld [vmem:[%s2 + $0x8] sm:$0xff]
    %v293 = vld [vmem:[%s2 + $0x10] sm:$0xff]
    %v294 = vld [vmem:[%s2 + $0x18] sm:$0xff]
    %v295 = vmul.f32 %v287, %v291
    %v296 = vmul.f32 %v288, %v292
    %v297 = vmul.f32 %v289, %v293
    %v298 = vmul.f32 %v290, %v294
    %v299 = vld [vmem:[%s3] sm:$0xff]
    %v300 = vld [vmem:[%s3 + $0x8] sm:$0xff]
    %v301 = vld [vmem:[%s3 + $0x10] sm:$0xff]
    %v302 = vld [vmem:[%s3 + $0x18] sm:$0xff]
    %v303 = vmul.f32 %v251, %v295
    %v304 = vmul.f32 %v252, %v296
    %v305 = vmul.f32 %v253, %v297
    %v306 = vmul.f32 %v254, %v298
    %v307 = vsub.f32 %v299, %v303
    %v308 = vsub.f32 %v300, %v304
    %v309 = vsub.f32 %v301, %v305
    %v310 = vsub.f32 %v302, %v306
    %312 = vset.pattern.permute.xlu0 0
    %313 = vperm.xlu0 %312, %v295
    %v314 = vpop.permute.xlu0 %313
    %317 = vset.pattern.permute.xlu0 0
    %318 = vperm.xlu0 %317, %v296
    %v319 = vpop.permute.xlu0 %318
    %322 = vset.pattern.permute.xlu0 0
    %323 = vperm.xlu0 %322, %v297
    %v324 = vpop.permute.xlu0 %323
    %327 = vset.pattern.permute.xlu0 0
    %328 = vperm.xlu0 %327, %v298
    %v329 = vpop.permute.xlu0 %328
    %v331 = vmul.f32 %v219, %v314
    %v332 = vmul.f32 %v222, %v319
    %v333 = vmul.f32 %v227, %v324
    %v334 = vmul.f32 %v230, %v329
    %336 = vset.pattern.permute.xlu0 0
    %337 = vperm.xlu0 %336, %v307
    %v338 = vpop.permute.xlu0 %337
    %341 = vset.pattern.permute.xlu0 0
    %342 = vperm.xlu0 %341, %v308
    %v343 = vpop.permute.xlu0 %342
    %346 = vset.pattern.permute.xlu0 0
    %347 = vperm.xlu0 %346, %v309
    %v348 = vpop.permute.xlu0 %347
    %351 = vset.pattern.permute.xlu0 0
    %352 = vperm.xlu0 %351, %v310
    %v353 = vpop.permute.xlu0 %352
    %v355 = vadd.f32 %v331, %v338
    %v356 = vadd.f32 %v332, %v343
    %v357 = vadd.f32 %v333, %v348
    %v358 = vadd.f32 %v334, %v353
    %v359 = vmax.f32 %v355, 0.0
    %v360 = vmax.f32 %v356, 0.0
    %v361 = vmax.f32 %v357, 0.0
    %v362 = vmax.f32 %v358, 0.0
    %363 = vst.msk [vmem:[%s4] sm:$0xff] %vm233, %v359
    %364 = vst.msk [vmem:[%s4 + $0x8] sm:$0xff] %vm233, %v360
    %365 = vst.msk [vmem:[%s4 + $0x10] sm:$0xff] %vm233, %v361
    %366 = vst.msk [vmem:[%s4 + $0x18] sm:$0xff] %vm233, %v362
    // Predicated region
    $region22: #{_lambda_.4} parent=1 // pred_check
      _
    $region23: #{_lambda_.4} parent=1 // pred_check_branch
      %368 = sbr.rel (0) target = $region25
    $region24: #{_lambda_.4} parent=1 // pred_region
      _
    $region25: #{_lambda_.4} parent=1 // pred_fallthru
      _
    // Predicated region
    $region26: #{_lambda_.4} parent=1 // pred_check
      _
    $region27: #{_lambda_.4} parent=1 // pred_check_branch
      %370 = sbr.rel (0) target = $region29
    $region28: #{_lambda_.4} parent=1 // pred_region
      _
    $region29: #{_lambda_.4} parent=1 // pred_fallthru
      _
    %371 = vsyncpa [#allocation3], 1

// kernel: _lambda_.5
$region0: #{_lambda_.5}
  #allocation0 [shape = 'u32[]', space=smem, size = 0x4, offset = 0x4, fixed_abs, tag = 'smem constant byte address 0x4 - core index']
  #allocation1 [shape = 'u32[144,128]{1,0:T(1,128)}', space=vmem, size = 0x12000, scoped, tag = 'internal scratch']
  %s0 = inlined_call_operand.vmem [shape: bf16[4,128,32], index: 0, kind: input, shape index: {}]
  %s1 = inlined_call_operand.vmem [shape: bf16[4,16,128], index: 1, kind: input, shape index: {}]
  %s2 = inlined_call_operand.vmem [shape: f32[16,1], index: 2, kind: input, shape index: {}]
  %s3 = inlined_call_operand.vmem [shape: f32[16,1], index: 3, kind: input, shape index: {}]
  %s4 = inlined_call_operand.vmem [shape: f32[4,16,32], index: 4, kind: output, shape index: {}]
  %s5 = sld [smem:[#allocation0]]
  $region26: #{_lambda_.5} parent=0
    _
  %s7 = ssub.s32 1, %s5
  %s8 = scalar_select 0, %s7, %s5
  // Predicated region
  $region2: #{_lambda_.5} parent=0 // pred_check
    _
  $region3: #{_lambda_.5} parent=0 // pred_check_branch
    %10 = sbr.rel (0) target = $region5
  $region4: #{_lambda_.5} parent=0 // pred_region
    _
  $region5: #{_lambda_.5} parent=0 // pred_fallthru
    _
  // Predicated region
  $region6: #{_lambda_.5} parent=0 // pred_check
    _
  $region7: #{_lambda_.5} parent=0 // pred_check_branch
    %12 = sbr.rel (0) target = $region9
  $region8: #{_lambda_.5} parent=0 // pred_region
    _
  $region9: #{_lambda_.5} parent=0 // pred_fallthru
    _
  // Predicated region
  $region10: #{_lambda_.5} parent=0 // pred_check
    _
  $region11: #{_lambda_.5} parent=0 // pred_check_branch
    %14 = sbr.rel (0) target = $region13
  $region12: #{_lambda_.5} parent=0 // pred_region
    _
  $region13: #{_lambda_.5} parent=0 // pred_fallthru
    _
  // Predicated region
  $region14: #{_lambda_.5} parent=0 // pred_check
    _
  $region15: #{_lambda_.5} parent=0 // pred_check_branch
    %16 = sbr.rel (0) target = $region17
  $region16: #{_lambda_.5} parent=0 // pred_region
    _
  $region17: #{_lambda_.5} parent=0 // pred_fallthru
    _
  %v18 = vld [vmem:[%s1] sm:$0xf]
  %v19 = vld [vmem:[%s1 + $0x4] sm:$0xf]
  %v20 = vld [vmem:[%s0] sm:$0xf]
  %v21 = vld [vmem:[%s0 + $0x4] sm:$0xf]
  %v22 = vld [vmem:[%s0 + $0x8] sm:$0xf]
  %v23 = vld [vmem:[%s0 + $0xc] sm:$0xf]
  %v24 = vld [vmem:[%s0 + $0x10] sm:$0xf]
  %v25 = vld [vmem:[%s0 + $0x14] sm:$0xf]
  %v26 = vld [vmem:[%s0 + $0x18] sm:$0xf]
  %v27 = vld [vmem:[%s0 + $0x1c] sm:$0xf]
  %v28 = vld [vmem:[%s0 + $0x20] sm:$0xf]
  %v29 = vld [vmem:[%s0 + $0x24] sm:$0xf]
  %v30 = vld [vmem:[%s0 + $0x28] sm:$0xf]
  %v31 = vld [vmem:[%s0 + $0x2c] sm:$0xf]
  %v32 = vld [vmem:[%s0 + $0x30] sm:$0xf]
  %v33 = vld [vmem:[%s0 + $0x34] sm:$0xf]
  %v34 = vld [vmem:[%s0 + $0x38] sm:$0xf]
  %v35 = vld [vmem:[%s0 + $0x3c] sm:$0xf]
  %v38 = vunpack.c.l.b16 %v18
  %v39 = vunpack.c.l.b16 %v19
  %v40 = vpack.c.b16 %v39, %v38
  %v58 = vunpack.c.l.b16 %v20
  %v59 = vunpack.c.l.b16 %v21
  %v60 = vunpack.c.l.b16 %v22
  %v61 = vunpack.c.l.b16 %v23
  %v62 = vunpack.c.l.b16 %v24
  %v63 = vunpack.c.l.b16 %v25
  %v64 = vunpack.c.l.b16 %v26
  %v65 = vunpack.c.l.b16 %v27
  %v66 = vunpack.c.l.b16 %v28
  %v67 = vunpack.c.l.b16 %v29
  %v68 = vunpack.c.l.b16 %v30
  %v69 = vunpack.c.l.b16 %v31
  %v70 = vunpack.c.l.b16 %v32
  %v71 = vunpack.c.l.b16 %v33
  %v72 = vunpack.c.l.b16 %v34
  %v73 = vunpack.c.l.b16 %v35
  %v74 = vpack.c.b16 %v59, %v58
  %v75 = vpack.c.b16 %v61, %v60
  %v76 = vpack.c.b16 %v63, %v62
  %v77 = vpack.c.b16 %v65, %v64
  %v78 = vpack.c.b16 %v67, %v66
  %v79 = vpack.c.b16 %v69, %v68
  %v80 = vpack.c.b16 %v71, %v70
  %v81 = vpack.c.b16 %v73, %v72
  %90 = vmatprep.subr.bf16.mxu0 0
  %91 = vmatpush1.bf16.msra.mxu0 %v81
  %92 = vmatprep.subr.bf16.mxu0 0
  %93 = vmatpush1.bf16.msra.mxu0 %v80
  %94 = vmatprep.subr.bf16.mxu0 0
  %95 = vmatpush1.bf16.msra.mxu0 %v79
  %96 = vmatprep.subr.bf16.mxu0 0
  %97 = vmatpush1.bf16.msra.mxu0 %v78
  %98 = vmatprep.subr.bf16.mxu0 0
  %99 = vmatpush1.bf16.msra.mxu0 %v77
  %100 = vmatprep.subr.bf16.mxu0 0
  %101 = vmatpush1.bf16.msra.mxu0 %v76
  %102 = vmatprep.subr.bf16.mxu0 0
  %103 = vmatpush1.bf16.msra.mxu0 %v75
  %104 = vmatprep.subr.bf16.mxu0 0
  %105 = vmatpush1.bf16.msra.mxu0 %v74
  %106 = vmatprep.subr.bf16.mxu0 0
  %107 = vmatpush2.bf16.msra.mxu0 0
  %108 = vmatprep.subr.bf16.mxu0 0
  %109 = vmatpush2.bf16.msra.mxu0 0
  %110 = vmatprep.subr.bf16.mxu0 0
  %111 = vmatpush2.bf16.msra.mxu0 0
  %112 = vmatprep.subr.bf16.mxu0 0
  %113 = vmatpush2.bf16.msra.mxu0 0
  %114 = vmatprep.subr.bf16.mxu0 0
  %115 = vmatpush2.bf16.msra.mxu0 0
  %116 = vmatprep.subr.bf16.mxu0 0
  %117 = vmatpush2.bf16.msra.mxu0 0
  %118 = vmatprep.subr.bf16.mxu0 0
  %119 = vmatpush2.bf16.msra.mxu0 0
  %120 = vmatprep.subr.bf16.mxu0 0
  %121 = vmatpush2.bf16.msra.mxu0 0
  %122 = vmatprep.mubr.bf16.mxu0 0
  %123 = vmatmul.mubr.bf16.gmra.mxu0 %v40
  %v124 = vpop.f32.mrf.mxu0
  %v125 = vadd.f32 0.0, %v124
  %v126 = vpop.f32.mrf.mxu0
  %v127 = vpop.f32.mrf.mxu0
  %v128 = vadd.f32 0.0, %v127
  %v129 = vpop.f32.mrf.mxu0
  %130 = vdwg.mxu0
  %s131 = scalar_lea.vmem %s1, 8
  %v132 = vld [vmem:[%s131] sm:$0xf]
  %v133 = vld [vmem:[%s131 + $0x4] sm:$0xf]
  %s134 = scalar_lea.vmem %s0, 64
  %v135 = vld [vmem:[%s134] sm:$0xf]
  %v136 = vld [vmem:[%s134 + $0x4] sm:$0xf]
  %v137 = vld [vmem:[%s134 + $0x8] sm:$0xf]
  %v138 = vld [vmem:[%s134 + $0xc] sm:$0xf]
  %v139 = vld [vmem:[%s134 + $0x10] sm:$0xf]
  %v140 = vld [vmem:[%s134 + $0x14] sm:$0xf]
  %v141 = vld [vmem:[%s134 + $0x18] sm:$0xf]
  %v142 = vld [vmem:[%s134 + $0x1c] sm:$0xf]
  %v143 = vld [vmem:[%s134 + $0x20] sm:$0xf]
  %v144 = vld [vmem:[%s134 + $0x24] sm:$0xf]
  %v145 = vld [vmem:[%s134 + $0x28] sm:$0xf]
  %v146 = vld [vmem:[%s134 + $0x2c] sm:$0xf]
  %v147 = vld [vmem:[%s134 + $0x30] sm:$0xf]
  %v148 = vld [vmem:[%s134 + $0x34] sm:$0xf]
  %v149 = vld [vmem:[%s134 + $0x38] sm:$0xf]
  %v150 = vld [vmem:[%s134 + $0x3c] sm:$0xf]
  %v153 = vunpack.c.l.b16 %v132
  %v154 = vunpack.c.l.b16 %v133
  %v155 = vpack.c.b16 %v154, %v153
  %v173 = vunpack.c.l.b16 %v135
  %v174 = vunpack.c.l.b16 %v136
  %v175 = vunpack.c.l.b16 %v137
  %v176 = vunpack.c.l.b16 %v138
  %v177 = vunpack.c.l.b16 %v139
  %v178 = vunpack.c.l.b16 %v140
  %v179 = vunpack.c.l.b16 %v141
  %v180 = vunpack.c.l.b16 %v142
  %v181 = vunpack.c.l.b16 %v143
  %v182 = vunpack.c.l.b16 %v144
  %v183 = vunpack.c.l.b16 %v145
  %v184 = vunpack.c.l.b16 %v146
  %v185 = vunpack.c.l.b16 %v147
  %v186 = vunpack.c.l.b16 %v148
  %v187 = vunpack.c.l.b16 %v149
  %v188 = vunpack.c.l.b16 %v150
  %v189 = vpack.c.b16 %v174, %v173
  %v190 = vpack.c.b16 %v176, %v175
  %v191 = vpack.c.b16 %v178, %v177
  %v192 = vpack.c.b16 %v180, %v179
  %v193 = vpack.c.b16 %v182, %v181
  %v194 = vpack.c.b16 %v184, %v183
  %v195 = vpack.c.b16 %v186, %v185
  %v196 = vpack.c.b16 %v188, %v187
  %205 = vmatprep.subr.bf16.mxu0 0
  %206 = vmatpush1.bf16.msra.mxu0 %v196
  %207 = vmatprep.subr.bf16.mxu0 0
  %208 = vmatpush1.bf16.msra.mxu0 %v195
  %209 = vmatprep.subr.bf16.mxu0 0
  %210 = vmatpush1.bf16.msra.mxu0 %v194
  %211 = vmatprep.subr.bf16.mxu0 0
  %212 = vmatpush1.bf16.msra.mxu0 %v193
  %213 = vmatprep.subr.bf16.mxu0 0
  %214 = vmatpush1.bf16.msra.mxu0 %v192
  %215 = vmatprep.subr.bf16.mxu0 0
  %216 = vmatpush1.bf16.msra.mxu0 %v191
  %217 = vmatprep.subr.bf16.mxu0 0
  %218 = vmatpush1.bf16.msra.mxu0 %v190
  %219 = vmatprep.subr.bf16.mxu0 0
  %220 = vmatpush1.bf16.msra.mxu0 %v189
  %221 = vmatprep.subr.bf16.mxu0 0
  %222 = vmatpush2.bf16.msra.mxu0 0
  %223 = vmatprep.subr.bf16.mxu0 0
  %224 = vmatpush2.bf16.msra.mxu0 0
  %225 = vmatprep.subr.bf16.mxu0 0
  %226 = vmatpush2.bf16.msra.mxu0 0
  %227 = vmatprep.subr.bf16.mxu0 0
  %228 = vmatpush2.bf16.msra.mxu0 0
  %229 = vmatprep.subr.bf16.mxu0 0
  %230 = vmatpush2.bf16.msra.mxu0 0
  %231 = vmatprep.subr.bf16.mxu0 0
  %232 = vmatpush2.bf16.msra.mxu0 0
  %233 = vmatprep.subr.bf16.mxu0 0
  %234 = vmatpush2.bf16.msra.mxu0 0
  %235 = vmatprep.subr.bf16.mxu0 0
  %236 = vmatpush2.bf16.msra.mxu0 0
  %237 = vmatprep.mubr.bf16.mxu0 0
  %238 = vmatmul.mubr.bf16.gmra.mxu0 %v155
  %v239 = vpop.f32.mrf.mxu0
  %v240 = vadd.f32 0.0, %v239
  %v241 = vpop.f32.mrf.mxu0
  %v242 = vpop.f32.mrf.mxu0
  %v243 = vadd.f32 0.0, %v242
  %v244 = vpop.f32.mrf.mxu0
  %245 = vdwg.mxu0
  %s246 = scalar_lea.vmem %s1, 16
  %v247 = vld [vmem:[%s246] sm:$0xf]
  %v248 = vld [vmem:[%s246 + $0x4] sm:$0xf]
  %s249 = scalar_lea.vmem %s0, 128
  %v250 = vld [vmem:[%s249] sm:$0xf]
  %v251 = vld [vmem:[%s249 + $0x4] sm:$0xf]
  %v252 = vld [vmem:[%s249 + $0x8] sm:$0xf]
  %v253 = vld [vmem:[%s249 + $0xc] sm:$0xf]
  %v254 = vld [vmem:[%s249 + $0x10] sm:$0xf]
  %v255 = vld [vmem:[%s249 + $0x14] sm:$0xf]
  %v256 = vld [vmem:[%s249 + $0x18] sm:$0xf]
  %v257 = vld [vmem:[%s249 + $0x1c] sm:$0xf]
  %v258 = vld [vmem:[%s249 + $0x20] sm:$0xf]
  %v259 = vld [vmem:[%s249 + $0x24] sm:$0xf]
  %v260 = vld [vmem:[%s249 + $0x28] sm:$0xf]
  %v261 = vld [vmem:[%s249 + $0x2c] sm:$0xf]
  %v262 = vld [vmem:[%s249 + $0x30] sm:$0xf]
  %v263 = vld [vmem:[%s249 + $0x34] sm:$0xf]
  %v264 = vld [vmem:[%s249 + $0x38] sm:$0xf]
  %v265 = vld [vmem:[%s249 + $0x3c] sm:$0xf]
  %v268 = vunpack.c.l.b16 %v247
  %v269 = vunpack.c.l.b16 %v248
  %v270 = vpack.c.b16 %v269, %v268
  %v288 = vunpack.c.l.b16 %v250
  %v289 = vunpack.c.l.b16 %v251
  %v290 = vunpack.c.l.b16 %v252
  %v291 = vunpack.c.l.b16 %v253
  %v292 = vunpack.c.l.b16 %v254
  %v293 = vunpack.c.l.b16 %v255
  %v294 = vunpack.c.l.b16 %v256
  %v295 = vunpack.c.l.b16 %v257
  %v296 = vunpack.c.l.b16 %v258
  %v297 = vunpack.c.l.b16 %v259
  %v298 = vunpack.c.l.b16 %v260
  %v299 = vunpack.c.l.b16 %v261
  %v300 = vunpack.c.l.b16 %v262
  %v301 = vunpack.c.l.b16 %v263
  %v302 = vunpack.c.l.b16 %v264
  %v303 = vunpack.c.l.b16 %v265
  %v304 = vpack.c.b16 %v289, %v288
  %v305 = vpack.c.b16 %v291, %v290
  %v306 = vpack.c.b16 %v293, %v292
  %v307 = vpack.c.b16 %v295, %v294
  %v308 = vpack.c.b16 %v297, %v296
  %v309 = vpack.c.b16 %v299, %v298
  %v310 = vpack.c.b16 %v301, %v300
  %v311 = vpack.c.b16 %v303, %v302
  %320 = vmatprep.subr.bf16.mxu0 0
  %321 = vmatpush1.bf16.msra.mxu0 %v311
  %322 = vmatprep.subr.bf16.mxu0 0
  %323 = vmatpush1.bf16.msra.mxu0 %v310
  %324 = vmatprep.subr.bf16.mxu0 0
  %325 = vmatpush1.bf16.msra.mxu0 %v309
  %326 = vmatprep.subr.bf16.mxu0 0
  %327 = vmatpush1.bf16.msra.mxu0 %v308
  %328 = vmatprep.subr.bf16.mxu0 0
  %329 = vmatpush1.bf16.msra.mxu0 %v307
  %330 = vmatprep.subr.bf16.mxu0 0
  %331 = vmatpush1.bf16.msra.mxu0 %v306
  %332 = vmatprep.subr.bf16.mxu0 0
  %333 = vmatpush1.bf16.msra.mxu0 %v305
  %334 = vmatprep.subr.bf16.mxu0 0
  %335 = vmatpush1.bf16.msra.mxu0 %v304
  %336 = vmatprep.subr.bf16.mxu0 0
  %337 = vmatpush2.bf16.msra.mxu0 0
  %338 = vmatprep.subr.bf16.mxu0 0
  %339 = vmatpush2.bf16.msra.mxu0 0
  %340 = vmatprep.subr.bf16.mxu0 0
  %341 = vmatpush2.bf16.msra.mxu0 0
  %342 = vmatprep.subr.bf16.mxu0 0
  %343 = vmatpush2.bf16.msra.mxu0 0
  %344 = vmatprep.subr.bf16.mxu0 0
  %345 = vmatpush2.bf16.msra.mxu0 0
  %346 = vmatprep.subr.bf16.mxu0 0
  %347 = vmatpush2.bf16.msra.mxu0 0
  %348 = vmatprep.subr.bf16.mxu0 0
  %349 = vmatpush2.bf16.msra.mxu0 0
  %350 = vmatprep.subr.bf16.mxu0 0
  %351 = vmatpush2.bf16.msra.mxu0 0
  %352 = vmatprep.mubr.bf16.mxu0 0
  %353 = vmatmul.mubr.bf16.gmra.mxu0 %v270
  %v354 = vpop.f32.mrf.mxu0
  %v355 = vadd.f32 0.0, %v354
  %v356 = vpop.f32.mrf.mxu0
  %v357 = vpop.f32.mrf.mxu0
  %v358 = vadd.f32 0.0, %v357
  %v359 = vpop.f32.mrf.mxu0
  %360 = vdwg.mxu0
  %s361 = scalar_lea.vmem %s1, 24
  %v362 = vld [vmem:[%s361] sm:$0xf]
  %v363 = vld [vmem:[%s361 + $0x4] sm:$0xf]
  %s364 = scalar_lea.vmem %s0, 192
  %v365 = vld [vmem:[%s364] sm:$0xf]
  %v366 = vld [vmem:[%s364 + $0x4] sm:$0xf]
  %v367 = vld [vmem:[%s364 + $0x8] sm:$0xf]
  %v368 = vld [vmem:[%s364 + $0xc] sm:$0xf]
  %v369 = vld [vmem:[%s364 + $0x10] sm:$0xf]
  %v370 = vld [vmem:[%s364 + $0x14] sm:$0xf]
  %v371 = vld [vmem:[%s364 + $0x18] sm:$0xf]
  %v372 = vld [vmem:[%s364 + $0x1c] sm:$0xf]
  %v373 = vld [vmem:[%s364 + $0x20] sm:$0xf]
  %v374 = vld [vmem:[%s364 + $0x24] sm:$0xf]
  %v375 = vld [vmem:[%s364 + $0x28] sm:$0xf]
  %v376 = vld [vmem:[%s364 + $0x2c] sm:$0xf]
  %v377 = vld [vmem:[%s364 + $0x30] sm:$0xf]
  %v378 = vld [vmem:[%s364 + $0x34] sm:$0xf]
  %v379 = vld [vmem:[%s364 + $0x38] sm:$0xf]
  %v380 = vld [vmem:[%s364 + $0x3c] sm:$0xf]
  %v383 = vunpack.c.l.b16 %v362
  %v384 = vunpack.c.l.b16 %v363
  %v385 = vpack.c.b16 %v384, %v383
  %v403 = vunpack.c.l.b16 %v365
  %v404 = vunpack.c.l.b16 %v366
  %v405 = vunpack.c.l.b16 %v367
  %v406 = vunpack.c.l.b16 %v368
  %v407 = vunpack.c.l.b16 %v369
  %v408 = vunpack.c.l.b16 %v370
  %v409 = vunpack.c.l.b16 %v371
  %v410 = vunpack.c.l.b16 %v372
  %v411 = vunpack.c.l.b16 %v373
  %v412 = vunpack.c.l.b16 %v374
  %v413 = vunpack.c.l.b16 %v375
  %v414 = vunpack.c.l.b16 %v376
  %v415 = vunpack.c.l.b16 %v377
  %v416 = vunpack.c.l.b16 %v378
  %v417 = vunpack.c.l.b16 %v379
  %v418 = vunpack.c.l.b16 %v380
  %v419 = vpack.c.b16 %v404, %v403
  %v420 = vpack.c.b16 %v406, %v405
  %v421 = vpack.c.b16 %v408, %v407
  %v422 = vpack.c.b16 %v410, %v409
  %v423 = vpack.c.b16 %v412, %v411
  %v424 = vpack.c.b16 %v414, %v413
  %v425 = vpack.c.b16 %v416, %v415
  %v426 = vpack.c.b16 %v418, %v417
  %435 = vmatprep.subr.bf16.mxu0 0
  %436 = vmatpush1.bf16.msra.mxu0 %v426
  %437 = vmatprep.subr.bf16.mxu0 0
  %438 = vmatpush1.bf16.msra.mxu0 %v425
  %439 = vmatprep.subr.bf16.mxu0 0
  %440 = vmatpush1.bf16.msra.mxu0 %v424
  %441 = vmatprep.subr.bf16.mxu0 0
  %442 = vmatpush1.bf16.msra.mxu0 %v423
  %443 = vmatprep.subr.bf16.mxu0 0
  %444 = vmatpush1.bf16.msra.mxu0 %v422
  %445 = vmatprep.subr.bf16.mxu0 0
  %446 = vmatpush1.bf16.msra.mxu0 %v421
  %447 = vmatprep.subr.bf16.mxu0 0
  %448 = vmatpush1.bf16.msra.mxu0 %v420
  %449 = vmatprep.subr.bf16.mxu0 0
  %450 = vmatpush1.bf16.msra.mxu0 %v419
  %451 = vmatprep.subr.bf16.mxu0 0
  %452 = vmatpush2.bf16.msra.mxu0 0
  %453 = vmatprep.subr.bf16.mxu0 0
  %454 = vmatpush2.bf16.msra.mxu0 0
  %455 = vmatprep.subr.bf16.mxu0 0
  %456 = vmatpush2.bf16.msra.mxu0 0
  %457 = vmatprep.subr.bf16.mxu0 0
  %458 = vmatpush2.bf16.msra.mxu0 0
  %459 = vmatprep.subr.bf16.mxu0 0
  %460 = vmatpush2.bf16.msra.mxu0 0
  %461 = vmatprep.subr.bf16.mxu0 0
  %462 = vmatpush2.bf16.msra.mxu0 0
  %463 = vmatprep.subr.bf16.mxu0 0
  %464 = vmatpush2.bf16.msra.mxu0 0
  %465 = vmatprep.subr.bf16.mxu0 0
  %466 = vmatpush2.bf16.msra.mxu0 0
  %467 = vmatprep.mubr.bf16.mxu0 0
  %468 = vmatmul.mubr.bf16.gmra.mxu0 %v385
  %v469 = vpop.f32.mrf.mxu0
  %v470 = vadd.f32 0.0, %v469
  %v471 = vpop.f32.mrf.mxu0
  %v472 = vpop.f32.mrf.mxu0
  %v473 = vadd.f32 0.0, %v472
  %v474 = vpop.f32.mrf.mxu0
  %475 = vdwg.mxu0
  %vm476 = vcmask 261120
  %v477 = vsel %vm476, %v125, 0.0
  %478 = vadd.xlane.f32.xlu0 %v477
  %v479 = vpop.xlane.xlu0 %478
  %v480 = vsel %vm476, %v128, 0.0
  %481 = vadd.xlane.f32.xlu0 %v480
  %v482 = vpop.xlane.xlu0 %481
  %v483 = vadd.f32 %v479, 0.0
  %v484 = vadd.f32 %v482, 0.0
  %v485 = vsel %vm476, %v240, 0.0
  %486 = vadd.xlane.f32.xlu0 %v485
  %v487 = vpop.xlane.xlu0 %486
  %v488 = vsel %vm476, %v243, 0.0
  %489 = vadd.xlane.f32.xlu0 %v488
  %v490 = vpop.xlane.xlu0 %489
  %v491 = vadd.f32 %v483, %v487
  %v492 = vadd.f32 %v484, %v490
  %v493 = vsel %vm476, %v355, 0.0
  %494 = vadd.xlane.f32.xlu0 %v493
  %v495 = vpop.xlane.xlu0 %494
  %v496 = vsel %vm476, %v358, 0.0
  %497 = vadd.xlane.f32.xlu0 %v496
  %v498 = vpop.xlane.xlu0 %497
  %v499 = vadd.f32 %v491, %v495
  %v500 = vadd.f32 %v492, %v498
  %v501 = vsel %vm476, %v470, 0.0
  %502 = vadd.xlane.f32.xlu0 %v501
  %v503 = vpop.xlane.xlu0 %502
  %v504 = vsel %vm476, %v473, 0.0
  %505 = vadd.xlane.f32.xlu0 %v504
  %v506 = vpop.xlane.xlu0 %505
  %v507 = vadd.f32 %v499, %v503
  %v508 = vadd.f32 %v500, %v506
  %v509 = vrcp.pop 128.0
  %v510 = vmul.f32 %v507, %v509
  %v511 = vmul.f32 %v508, %v509
  %v512 = vsub.f32 %v125, %v510
  %v513 = vsub.f32 %v128, %v511
  %v514 = vmul.f32 %v512, %v512
  %v515 = vmul.f32 %v513, %v513
  %v516 = vsel %vm476, %v514, 0.0
  %517 = vadd.xlane.f32.xlu0 %v516
  %v518 = vpop.xlane.xlu0 %517
  %v519 = vsel %vm476, %v515, 0.0
  %520 = vadd.xlane.f32.xlu0 %v519
  %v521 = vpop.xlane.xlu0 %520
  %v522 = vadd.f32 %v518, 0.0
  %v523 = vadd.f32 %v521, 0.0
  %v524 = vsub.f32 %v240, %v510
  %v525 = vsub.f32 %v243, %v511
  %v526 = vmul.f32 %v524, %v524
  %v527 = vmul.f32 %v525, %v525
  %v528 = vsel %vm476, %v526, 0.0
  %529 = vadd.xlane.f32.xlu0 %v528
  %v530 = vpop.xlane.xlu0 %529
  %v531 = vsel %vm476, %v527, 0.0
  %532 = vadd.xlane.f32.xlu0 %v531
  %v533 = vpop.xlane.xlu0 %532
  %v534 = vadd.f32 %v522, %v530
  %v535 = vadd.f32 %v523, %v533
  %v536 = vsub.f32 %v355, %v510
  %v537 = vsub.f32 %v358, %v511
  %v538 = vmul.f32 %v536, %v536
  %v539 = vmul.f32 %v537, %v537
  %v540 = vsel %vm476, %v538, 0.0
  %541 = vadd.xlane.f32.xlu0 %v540
  %v542 = vpop.xlane.xlu0 %541
  %v543 = vsel %vm476, %v539, 0.0
  %544 = vadd.xlane.f32.xlu0 %v543
  %v545 = vpop.xlane.xlu0 %544
  %v546 = vadd.f32 %v534, %v542
  %v547 = vadd.f32 %v535, %v545
  %v548 = vsub.f32 %v470, %v510
  %v549 = vsub.f32 %v473, %v511
  %v550 = vmul.f32 %v548, %v548
  %v551 = vmul.f32 %v549, %v549
  %v552 = vsel %vm476, %v550, 0.0
  %553 = vadd.xlane.f32.xlu0 %v552
  %v554 = vpop.xlane.xlu0 %553
  %v555 = vsel %vm476, %v551, 0.0
  %556 = vadd.xlane.f32.xlu0 %v555
  %v557 = vpop.xlane.xlu0 %556
  %v558 = vadd.f32 %v546, %v554
  %v559 = vadd.f32 %v547, %v557
  %v560 = vmul.f32 %v558, %v509
  %v561 = vmul.f32 %v559, %v509
  %v562 = vadd.f32 %v560, 1e-05
  %v563 = vadd.f32 %v561, 1e-05
  %v564 = vrsqrt.pop %v562
  %v565 = vrsqrt.pop %v563
  %v566 = vld [vmem:[%s2] sm:$0xff]
  %v567 = vld [vmem:[%s2 + $0x8] sm:$0xff]
  %v568 = vmul.f32 %v564, %v566
  %v569 = vmul.f32 %v565, %v567
  %v570 = vld [vmem:[%s3] sm:$0xff]
  %v571 = vld [vmem:[%s3 + $0x8] sm:$0xff]
  %v572 = vmul.f32 %v510, %v568
  %v573 = vmul.f32 %v511, %v569
  %v574 = vsub.f32 %v570, %v572
  %v575 = vsub.f32 %v571, %v573
  %577 = vset.pattern.permute.xlu0 0
  %578 = vperm.xlu0 %577, %v568
  %v579 = vpop.permute.xlu0 %578
  %582 = vset.pattern.permute.xlu0 0
  %583 = vperm.xlu0 %582, %v569
  %v584 = vpop.permute.xlu0 %583
  %v586 = vmul.f32 %v125, %v579
  %v587 = vmul.f32 %v128, %v584
  %589 = vset.pattern.permute.xlu0 0
  %590 = vperm.xlu0 %589, %v574
  %v591 = vpop.permute.xlu0 %590
  %594 = vset.pattern.permute.xlu0 0
  %595 = vperm.xlu0 %594, %v575
  %v596 = vpop.permute.xlu0 %595
  %v598 = vadd.f32 %v586, %v591
  %v599 = vadd.f32 %v587, %v596
  %v600 = vmul.f32 %v240, %v579
  %v601 = vmul.f32 %v243, %v584
  %v602 = vadd.f32 %v600, %v591
  %v603 = vadd.f32 %v601, %v596
  %v604 = vmul.f32 %v355, %v579
  %v605 = vmul.f32 %v358, %v584
  %v606 = vadd.f32 %v604, %v591
  %v607 = vadd.f32 %v605, %v596
  %v608 = vmul.f32 %v470, %v579
  %v609 = vmul.f32 %v473, %v584
  %v610 = vadd.f32 %v608, %v591
  %v611 = vadd.f32 %v609, %v596
  %v612 = vmax.f32 %v598, 0.0
  %v613 = vmax.f32 %v599, 0.0
  %614 = vst.msk [vmem:[%s4] sm:$0xff] %vm476, %v612
  %615 = vst.msk [vmem:[%s4 + $0x8] sm:$0xff] %vm476, %v613
  %v616 = vmax.f32 %v602, 0.0
  %v617 = vmax.f32 %v603, 0.0
  %s618 = scalar_lea.vmem %s4, 16
  %619 = vst.msk [vmem:[%s618] sm:$0xff] %vm476, %v616
  %620 = vst.msk [vmem:[%s618 + $0x8] sm:$0xff] %vm476, %v617
  %v621 = vmax.f32 %v606, 0.0
  %v622 = vmax.f32 %v607, 0.0
  %s623 = scalar_lea.vmem %s4, 32
  %624 = vst.msk [vmem:[%s623] sm:$0xff] %vm476, %v621
  %625 = vst.msk [vmem:[%s623 + $0x8] sm:$0xff] %vm476, %v622
  %v626 = vmax.f32 %v610, 0.0
  %v627 = vmax.f32 %v611, 0.0
  %s628 = scalar_lea.vmem %s4, 48
  %629 = vst.msk [vmem:[%s628] sm:$0xff] %vm476, %v626
  %630 = vst.msk [vmem:[%s628 + $0x8] sm:$0xff] %vm476, %v627
  // Predicated region
  $region18: #{_lambda_.5} parent=0 // pred_check
    _
  $region19: #{_lambda_.5} parent=0 // pred_check_branch
    %632 = sbr.rel (0) target = $region21
  $region20: #{_lambda_.5} parent=0 // pred_region
    _
  $region21: #{_lambda_.5} parent=0 // pred_fallthru
    _
  // Predicated region
  $region22: #{_lambda_.5} parent=0 // pred_check
    _
  $region23: #{_lambda_.5} parent=0 // pred_check_branch
    %634 = sbr.rel (0) target = $region25
  $region24: #{_lambda_.5} parent=0 // pred_region
    _
  $region25: #{_lambda_.5} parent=0 // pred_fallthru
    _

// kernel: _lambda_.6
$region0: #{_lambda_.6}
  #allocation0 [shape = 'u32[]', space=smem, size = 0x4, offset = 0x4, fixed_abs, tag = 'smem constant byte address 0x4 - core index']
  #allocation1 [shape = 'u32[144,128]{1,0:T(1,128)}', space=vmem, size = 0x12000, scoped, tag = 'internal scratch']
  %s0 = inlined_call_operand.vmem [shape: bf16[4,64,128], index: 0, kind: input, shape index: {}]
  %s1 = inlined_call_operand.vmem [shape: bf16[4,8,64], index: 1, kind: input, shape index: {}]
  %s2 = inlined_call_operand.vmem [shape: f32[8,1], index: 2, kind: input, shape index: {}]
  %s3 = inlined_call_operand.vmem [shape: f32[8,1], index: 3, kind: input, shape index: {}]
  %s4 = inlined_call_operand.vmem [shape: f32[4,8,128], index: 4, kind: output, shape index: {}]
  %s5 = sld [smem:[#allocation0]]
  $region26: #{_lambda_.6} parent=0
    _
  %s7 = ssub.s32 1, %s5
  %s8 = scalar_select 0, %s7, %s5
  // Predicated region
  $region2: #{_lambda_.6} parent=0 // pred_check
    _
  $region3: #{_lambda_.6} parent=0 // pred_check_branch
    %10 = sbr.rel (0) target = $region5
  $region4: #{_lambda_.6} parent=0 // pred_region
    _
  $region5: #{_lambda_.6} parent=0 // pred_fallthru
    _
  // Predicated region
  $region6: #{_lambda_.6} parent=0 // pred_check
    _
  $region7: #{_lambda_.6} parent=0 // pred_check_branch
    %12 = sbr.rel (0) target = $region9
  $region8: #{_lambda_.6} parent=0 // pred_region
    _
  $region9: #{_lambda_.6} parent=0 // pred_fallthru
    _
  // Predicated region
  $region10: #{_lambda_.6} parent=0 // pred_check
    _
  $region11: #{_lambda_.6} parent=0 // pred_check_branch
    %14 = sbr.rel (0) target = $region13
  $region12: #{_lambda_.6} parent=0 // pred_region
    _
  $region13: #{_lambda_.6} parent=0 // pred_fallthru
    _
  // Predicated region
  $region14: #{_lambda_.6} parent=0 // pred_check
    _
  $region15: #{_lambda_.6} parent=0 // pred_check_branch
    %16 = sbr.rel (0) target = $region17
  $region16: #{_lambda_.6} parent=0 // pred_region
    _
  $region17: #{_lambda_.6} parent=0 // pred_fallthru
    _
  %v18 = vld [vmem:[%s1] sm:$0xf]
  %v19 = vld [vmem:[%s0] sm:$0xf]
  %v20 = vld [vmem:[%s0 + $0x4] sm:$0xf]
  %v21 = vld [vmem:[%s0 + $0x8] sm:$0xf]
  %v22 = vld [vmem:[%s0 + $0xc] sm:$0xf]
  %v23 = vld [vmem:[%s0 + $0x10] sm:$0xf]
  %v24 = vld [vmem:[%s0 + $0x14] sm:$0xf]
  %v25 = vld [vmem:[%s0 + $0x18] sm:$0xf]
  %v26 = vld [vmem:[%s0 + $0x1c] sm:$0xf]
  %v35 = vunpack.c.l.b16 %v19
  %v36 = vunpack.c.l.b16 %v20
  %v37 = vunpack.c.l.b16 %v21
  %v38 = vunpack.c.l.b16 %v22
  %v39 = vunpack.c.l.b16 %v23
  %v40 = vunpack.c.l.b16 %v24
  %v41 = vunpack.c.l.b16 %v25
  %v42 = vunpack.c.l.b16 %v26
  %v43 = vpack.c.b16 %v36, %v35
  %v44 = vpack.c.b16 %v38, %v37
  %v45 = vpack.c.b16 %v40, %v39
  %v46 = vpack.c.b16 %v42, %v41
  %vm51 = vcmask 523264
  %v53 = vsel %vm51, %v18, 0
  %55 = vmatprep.subr.bf16.mxu0 0
  %56 = vmatpush1.bf16.msra.mxu0 0
  %57 = vmatprep.subr.bf16.mxu0 0
  %58 = vmatpush1.bf16.msra.mxu0 0
  %59 = vmatprep.subr.bf16.mxu0 0
  %60 = vmatpush1.bf16.msra.mxu0 0
  %61 = vmatprep.subr.bf16.mxu0 0
  %62 = vmatpush1.bf16.msra.mxu0 0
  %63 = vmatprep.subr.bf16.mxu0 0
  %64 = vmatpush1.bf16.msra.mxu0 %v46
  %65 = vmatprep.subr.bf16.mxu0 0
  %66 = vmatpush1.bf16.msra.mxu0 %v45
  %67 = vmatprep.subr.bf16.mxu0 0
  %68 = vmatpush1.bf16.msra.mxu0 %v44
  %69 = vmatprep.subr.bf16.mxu0 0
  %70 = vmatpush1.bf16.msra.mxu0 %v43
  %71 = vmatprep.subr.bf16.mxu0 0
  %72 = vmatpush2.bf16.msra.mxu0 0
  %73 = vmatprep.subr.bf16.mxu0 0
  %74 = vmatpush2.bf16.msra.mxu0 0
  %75 = vmatprep.subr.bf16.mxu0 0
  %76 = vmatpush2.bf16.msra.mxu0 0
  %77 = vmatprep.subr.bf16.mxu0 0
  %78 = vmatpush2.bf16.msra.mxu0 0
  %79 = vmatprep.subr.bf16.mxu0 0
  %80 = vmatpush2.bf16.msra.mxu0 0
  %81 = vmatprep.subr.bf16.mxu0 0
  %82 = vmatpush2.bf16.msra.mxu0 0
  %83 = vmatprep.subr.bf16.mxu0 0
  %84 = vmatpush2.bf16.msra.mxu0 0
  %85 = vmatprep.subr.bf16.mxu0 0
  %86 = vmatpush2.bf16.msra.mxu0 0
  %87 = vmatprep.mubr.bf16.mxu0 0
  %88 = vmatmul.mubr.bf16.gmra.mxu0 %v53
  %v89 = vpop.f32.mrf.mxu0
  %v90 = vadd.f32 0.0, %v89
  %v91 = vpop.f32.mrf.mxu0
  %v92 = vpop.f32.mrf.mxu0
  %v93 = vpop.f32.mrf.mxu0
  %94 = vdwg.mxu0
  %s95 = scalar_lea.vmem %s1, 4
  %v96 = vld [vmem:[%s95] sm:$0xf]
  %s97 = scalar_lea.vmem %s0, 32
  %v98 = vld [vmem:[%s97] sm:$0xf]
  %v99 = vld [vmem:[%s97 + $0x4] sm:$0xf]
  %v100 = vld [vmem:[%s97 + $0x8] sm:$0xf]
  %v101 = vld [vmem:[%s97 + $0xc] sm:$0xf]
  %v102 = vld [vmem:[%s97 + $0x10] sm:$0xf]
  %v103 = vld [vmem:[%s97 + $0x14] sm:$0xf]
  %v104 = vld [vmem:[%s97 + $0x18] sm:$0xf]
  %v105 = vld [vmem:[%s97 + $0x1c] sm:$0xf]
  %v114 = vunpack.c.l.b16 %v98
  %v115 = vunpack.c.l.b16 %v99
  %v116 = vunpack.c.l.b16 %v100
  %v117 = vunpack.c.l.b16 %v101
  %v118 = vunpack.c.l.b16 %v102
  %v119 = vunpack.c.l.b16 %v103
  %v120 = vunpack.c.l.b16 %v104
  %v121 = vunpack.c.l.b16 %v105
  %v122 = vpack.c.b16 %v115, %v114
  %v123 = vpack.c.b16 %v117, %v116
  %v124 = vpack.c.b16 %v119, %v118
  %v125 = vpack.c.b16 %v121, %v120
  %v131 = vsel %vm51, %v96, 0
  %133 = vmatprep.subr.bf16.mxu0 0
  %134 = vmatpush1.bf16.msra.mxu0 0
  %135 = vmatprep.subr.bf16.mxu0 0
  %136 = vmatpush1.bf16.msra.mxu0 0
  %137 = vmatprep.subr.bf16.mxu0 0
  %138 = vmatpush1.bf16.msra.mxu0 0
  %139 = vmatprep.subr.bf16.mxu0 0
  %140 = vmatpush1.bf16.msra.mxu0 0
  %141 = vmatprep.subr.bf16.mxu0 0
  %142 = vmatpush1.bf16.msra.mxu0 %v125
  %143 = vmatprep.subr.bf16.mxu0 0
  %144 = vmatpush1.bf16.msra.mxu0 %v124
  %145 = vmatprep.subr.bf16.mxu0 0
  %146 = vmatpush1.bf16.msra.mxu0 %v123
  %147 = vmatprep.subr.bf16.mxu0 0
  %148 = vmatpush1.bf16.msra.mxu0 %v122
  %149 = vmatprep.subr.bf16.mxu0 0
  %150 = vmatpush2.bf16.msra.mxu0 0
  %151 = vmatprep.subr.bf16.mxu0 0
  %152 = vmatpush2.bf16.msra.mxu0 0
  %153 = vmatprep.subr.bf16.mxu0 0
  %154 = vmatpush2.bf16.msra.mxu0 0
  %155 = vmatprep.subr.bf16.mxu0 0
  %156 = vmatpush2.bf16.msra.mxu0 0
  %157 = vmatprep.subr.bf16.mxu0 0
  %158 = vmatpush2.bf16.msra.mxu0 0
  %159 = vmatprep.subr.bf16.mxu0 0
  %160 = vmatpush2.bf16.msra.mxu0 0
  %161 = vmatprep.subr.bf16.mxu0 0
  %162 = vmatpush2.bf16.msra.mxu0 0
  %163 = vmatprep.subr.bf16.mxu0 0
  %164 = vmatpush2.bf16.msra.mxu0 0
  %165 = vmatprep.mubr.bf16.mxu0 0
  %166 = vmatmul.mubr.bf16.gmra.mxu0 %v131
  %v167 = vpop.f32.mrf.mxu0
  %v168 = vadd.f32 0.0, %v167
  %v169 = vpop.f32.mrf.mxu0
  %v170 = vpop.f32.mrf.mxu0
  %v171 = vpop.f32.mrf.mxu0
  %172 = vdwg.mxu0
  %s173 = scalar_lea.vmem %s1, 8
  %v174 = vld [vmem:[%s173] sm:$0xf]
  %s175 = scalar_lea.vmem %s0, 64
  %v176 = vld [vmem:[%s175] sm:$0xf]
  %v177 = vld [vmem:[%s175 + $0x4] sm:$0xf]
  %v178 = vld [vmem:[%s175 + $0x8] sm:$0xf]
  %v179 = vld [vmem:[%s175 + $0xc] sm:$0xf]
  %v180 = vld [vmem:[%s175 + $0x10] sm:$0xf]
  %v181 = vld [vmem:[%s175 + $0x14] sm:$0xf]
  %v182 = vld [vmem:[%s175 + $0x18] sm:$0xf]
  %v183 = vld [vmem:[%s175 + $0x1c] sm:$0xf]
  %v192 = vunpack.c.l.b16 %v176
  %v193 = vunpack.c.l.b16 %v177
  %v194 = vunpack.c.l.b16 %v178
  %v195 = vunpack.c.l.b16 %v179
  %v196 = vunpack.c.l.b16 %v180
  %v197 = vunpack.c.l.b16 %v181
  %v198 = vunpack.c.l.b16 %v182
  %v199 = vunpack.c.l.b16 %v183
  %v200 = vpack.c.b16 %v193, %v192
  %v201 = vpack.c.b16 %v195, %v194
  %v202 = vpack.c.b16 %v197, %v196
  %v203 = vpack.c.b16 %v199, %v198
  %v209 = vsel %vm51, %v174, 0
  %211 = vmatprep.subr.bf16.mxu0 0
  %212 = vmatpush1.bf16.msra.mxu0 0
  %213 = vmatprep.subr.bf16.mxu0 0
  %214 = vmatpush1.bf16.msra.mxu0 0
  %215 = vmatprep.subr.bf16.mxu0 0
  %216 = vmatpush1.bf16.msra.mxu0 0
  %217 = vmatprep.subr.bf16.mxu0 0
  %218 = vmatpush1.bf16.msra.mxu0 0
  %219 = vmatprep.subr.bf16.mxu0 0
  %220 = vmatpush1.bf16.msra.mxu0 %v203
  %221 = vmatprep.subr.bf16.mxu0 0
  %222 = vmatpush1.bf16.msra.mxu0 %v202
  %223 = vmatprep.subr.bf16.mxu0 0
  %224 = vmatpush1.bf16.msra.mxu0 %v201
  %225 = vmatprep.subr.bf16.mxu0 0
  %226 = vmatpush1.bf16.msra.mxu0 %v200
  %227 = vmatprep.subr.bf16.mxu0 0
  %228 = vmatpush2.bf16.msra.mxu0 0
  %229 = vmatprep.subr.bf16.mxu0 0
  %230 = vmatpush2.bf16.msra.mxu0 0
  %231 = vmatprep.subr.bf16.mxu0 0
  %232 = vmatpush2.bf16.msra.mxu0 0
  %233 = vmatprep.subr.bf16.mxu0 0
  %234 = vmatpush2.bf16.msra.mxu0 0
  %235 = vmatprep.subr.bf16.mxu0 0
  %236 = vmatpush2.bf16.msra.mxu0 0
  %237 = vmatprep.subr.bf16.mxu0 0
  %238 = vmatpush2.bf16.msra.mxu0 0
  %239 = vmatprep.subr.bf16.mxu0 0
  %240 = vmatpush2.bf16.msra.mxu0 0
  %241 = vmatprep.subr.bf16.mxu0 0
  %242 = vmatpush2.bf16.msra.mxu0 0
  %243 = vmatprep.mubr.bf16.mxu0 0
  %244 = vmatmul.mubr.bf16.gmra.mxu0 %v209
  %v245 = vpop.f32.mrf.mxu0
  %v246 = vadd.f32 0.0, %v245
  %v247 = vpop.f32.mrf.mxu0
  %v248 = vpop.f32.mrf.mxu0
  %v249 = vpop.f32.mrf.mxu0
  %250 = vdwg.mxu0
  %s251 = scalar_lea.vmem %s1, 12
  %v252 = vld [vmem:[%s251] sm:$0xf]
  %s253 = scalar_lea.vmem %s0, 96
  %v254 = vld [vmem:[%s253] sm:$0xf]
  %v255 = vld [vmem:[%s253 + $0x4] sm:$0xf]
  %v256 = vld [vmem:[%s253 + $0x8] sm:$0xf]
  %v257 = vld [vmem:[%s253 + $0xc] sm:$0xf]
  %v258 = vld [vmem:[%s253 + $0x10] sm:$0xf]
  %v259 = vld [vmem:[%s253 + $0x14] sm:$0xf]
  %v260 = vld [vmem:[%s253 + $0x18] sm:$0xf]
  %v261 = vld [vmem:[%s253 + $0x1c] sm:$0xf]
  %v270 = vunpack.c.l.b16 %v254
  %v271 = vunpack.c.l.b16 %v255
  %v272 = vunpack.c.l.b16 %v256
  %v273 = vunpack.c.l.b16 %v257
  %v274 = vunpack.c.l.b16 %v258
  %v275 = vunpack.c.l.b16 %v259
  %v276 = vunpack.c.l.b16 %v260
  %v277 = vunpack.c.l.b16 %v261
  %v278 = vpack.c.b16 %v271, %v270
  %v279 = vpack.c.b16 %v273, %v272
  %v280 = vpack.c.b16 %v275, %v274
  %v281 = vpack.c.b16 %v277, %v276
  %v287 = vsel %vm51, %v252, 0
  %289 = vmatprep.subr.bf16.mxu0 0
  %290 = vmatpush1.bf16.msra.mxu0 0
  %291 = vmatprep.subr.bf16.mxu0 0
  %292 = vmatpush1.bf16.msra.mxu0 0
  %293 = vmatprep.subr.bf16.mxu0 0
  %294 = vmatpush1.bf16.msra.mxu0 0
  %295 = vmatprep.subr.bf16.mxu0 0
  %296 = vmatpush1.bf16.msra.mxu0 0
  %297 = vmatprep.subr.bf16.mxu0 0
  %298 = vmatpush1.bf16.msra.mxu0 %v281
  %299 = vmatprep.subr.bf16.mxu0 0
  %300 = vmatpush1.bf16.msra.mxu0 %v280
  %301 = vmatprep.subr.bf16.mxu0 0
  %302 = vmatpush1.bf16.msra.mxu0 %v279
  %303 = vmatprep.subr.bf16.mxu0 0
  %304 = vmatpush1.bf16.msra.mxu0 %v278
  %305 = vmatprep.subr.bf16.mxu0 0
  %306 = vmatpush2.bf16.msra.mxu0 0
  %307 = vmatprep.subr.bf16.mxu0 0
  %308 = vmatpush2.bf16.msra.mxu0 0
  %309 = vmatprep.subr.bf16.mxu0 0
  %310 = vmatpush2.bf16.msra.mxu0 0
  %311 = vmatprep.subr.bf16.mxu0 0
  %312 = vmatpush2.bf16.msra.mxu0 0
  %313 = vmatprep.subr.bf16.mxu0 0
  %314 = vmatpush2.bf16.msra.mxu0 0
  %315 = vmatprep.subr.bf16.mxu0 0
  %316 = vmatpush2.bf16.msra.mxu0 0
  %317 = vmatprep.subr.bf16.mxu0 0
  %318 = vmatpush2.bf16.msra.mxu0 0
  %319 = vmatprep.subr.bf16.mxu0 0
  %320 = vmatpush2.bf16.msra.mxu0 0
  %321 = vmatprep.mubr.bf16.mxu0 0
  %322 = vmatmul.mubr.bf16.gmra.mxu0 %v287
  %v323 = vpop.f32.mrf.mxu0
  %v324 = vadd.f32 0.0, %v323
  %v325 = vpop.f32.mrf.mxu0
  %v326 = vpop.f32.mrf.mxu0
  %v327 = vpop.f32.mrf.mxu0
  %328 = vdwg.mxu0
  %329 = vadd.xlane.f32.xlu0 %v90
  %v330 = vpop.xlane.xlu0 %329
  %v331 = vadd.f32 %v330, 0.0
  %332 = vadd.xlane.f32.xlu0 %v168
  %v333 = vpop.xlane.xlu0 %332
  %v334 = vadd.f32 %v331, %v333
  %335 = vadd.xlane.f32.xlu0 %v246
  %v336 = vpop.xlane.xlu0 %335
  %v337 = vadd.f32 %v334, %v336
  %338 = vadd.xlane.f32.xlu0 %v324
  %v339 = vpop.xlane.xlu0 %338
  %v340 = vadd.f32 %v337, %v339
  %v341 = vrcp.pop 512.0
  %v342 = vmul.f32 %v340, %v341
  %v343 = vsub.f32 %v90, %v342
  %v344 = vmul.f32 %v343, %v343
  %345 = vadd.xlane.f32.xlu0 %v344
  %v346 = vpop.xlane.xlu0 %345
  %v347 = vadd.f32 %v346, 0.0
  %v348 = vsub.f32 %v168, %v342
  %v349 = vmul.f32 %v348, %v348
  %350 = vadd.xlane.f32.xlu0 %v349
  %v351 = vpop.xlane.xlu0 %350
  %v352 = vadd.f32 %v347, %v351
  %v353 = vsub.f32 %v246, %v342
  %v354 = vmul.f32 %v353, %v353
  %355 = vadd.xlane.f32.xlu0 %v354
  %v356 = vpop.xlane.xlu0 %355
  %v357 = vadd.f32 %v352, %v356
  %v358 = vsub.f32 %v324, %v342
  %v359 = vmul.f32 %v358, %v358
  %360 = vadd.xlane.f32.xlu0 %v359
  %v361 = vpop.xlane.xlu0 %360
  %v362 = vadd.f32 %v357, %v361
  %v363 = vmul.f32 %v362, %v341
  %v364 = vadd.f32 %v363, 1e-05
  %v365 = vrsqrt.pop %v364
  %v366 = vld [vmem:[%s2] sm:$0xff]
  %v367 = vmul.f32 %v365, %v366
  %v368 = vld [vmem:[%s3] sm:$0xff]
  %v369 = vmul.f32 %v342, %v367
  %v370 = vsub.f32 %v368, %v369
  %372 = vset.pattern.permute.xlu0 0
  %373 = vperm.xlu0 %372, %v367
  %v374 = vpop.permute.xlu0 %373
  %v376 = vmul.f32 %v90, %v374
  %378 = vset.pattern.permute.xlu0 0
  %379 = vperm.xlu0 %378, %v370
  %v380 = vpop.permute.xlu0 %379
  %v382 = vadd.f32 %v376, %v380
  %v383 = vmul.f32 %v168, %v374
  %v384 = vadd.f32 %v383, %v380
  %v385 = vmul.f32 %v246, %v374
  %v386 = vadd.f32 %v385, %v380
  %v387 = vmul.f32 %v324, %v374
  %v388 = vadd.f32 %v387, %v380
  %v389 = vmax.f32 %v382, 0.0
  %390 = vst [vmem:[%s4] sm:$0xff] %v389
  %v391 = vmax.f32 %v384, 0.0
  %s392 = scalar_lea.vmem %s4, 8
  %393 = vst [vmem:[%s392] sm:$0xff] %v391
  %v394 = vmax.f32 %v386, 0.0
  %s395 = scalar_lea.vmem %s4, 16
  %396 = vst [vmem:[%s395] sm:$0xff] %v394
  %v397 = vmax.f32 %v388, 0.0
  %s398 = scalar_lea.vmem %s4, 24
  %399 = vst [vmem:[%s398] sm:$0xff] %v397
  // Predicated region
  $region18: #{_lambda_.6} parent=0 // pred_check
    _
  $region19: #{_lambda_.6} parent=0 // pred_check_branch
    %401 = sbr.rel (0) target = $region21
  $region20: #{_lambda_.6} parent=0 // pred_region
    _
  $region21: #{_lambda_.6} parent=0 // pred_fallthru
    _
  // Predicated region
  $region22: #{_lambda_.6} parent=0 // pred_check
    _
  $region23: #{_lambda_.6} parent=0 // pred_check_branch
    %403 = sbr.rel (0) target = $region25
  $region24: #{_lambda_.6} parent=0 // pred_region
    _
  $region25: #{_lambda_.6} parent=0 // pred_fallthru
    _

// kernel: _lambda_.7
$region0: #{_lambda_.7}
  #allocation0 [shape = 'u32[]', space=smem, size = 0x4, offset = 0x4, fixed_abs, tag = 'smem constant byte address 0x4 - core index']
  #allocation1 [shape = 'u32[144,128]{1,0:T(1,128)}', space=vmem, size = 0x12000, scoped, tag = 'internal scratch']
  %s0 = inlined_call_operand.vmem [shape: bf16[4,32,512], index: 0, kind: input, shape index: {}]
  %s1 = inlined_call_operand.vmem [shape: bf16[4,3,32], index: 1, kind: input, shape index: {}]
  %s2 = inlined_call_operand.vmem [shape: f32[4,3,512], index: 2, kind: output, shape index: {}]
  %s3 = sld [smem:[#allocation0]]
  $region18: #{_lambda_.7} parent=0
    _
  %s5 = ssub.s32 1, %s3
  %s6 = scalar_select 0, %s5, %s3
  // Predicated region
  $region2: #{_lambda_.7} parent=0 // pred_check
    _
  $region3: #{_lambda_.7} parent=0 // pred_check_branch
    %8 = sbr.rel (0) target = $region5
  $region4: #{_lambda_.7} parent=0 // pred_region
    _
  $region5: #{_lambda_.7} parent=0 // pred_fallthru
    _
  // Predicated region
  $region6: #{_lambda_.7} parent=0 // pred_check
    _
  $region7: #{_lambda_.7} parent=0 // pred_check_branch
    %10 = sbr.rel (0) target = $region9
  $region8: #{_lambda_.7} parent=0 // pred_region
    _
  $region9: #{_lambda_.7} parent=0 // pred_fallthru
    _
  %v12 = vld [vmem:[%s1] sm:$0x3]
  %v13 = vld [vmem:[%s0] sm:$0xff]
  %v14 = vld [vmem:[%s0 + $0x8] sm:$0xff]
  %v15 = vld [vmem:[%s0 + $0x10] sm:$0xff]
  %v16 = vld [vmem:[%s0 + $0x18] sm:$0xff]
  %v17 = vld [vmem:[%s0 + $0x20] sm:$0xff]
  %v18 = vld [vmem:[%s0 + $0x28] sm:$0xff]
  %v19 = vld [vmem:[%s0 + $0x30] sm:$0xff]
  %v20 = vld [vmem:[%s0 + $0x38] sm:$0xff]
  %v29 = vunpack.c.l.b16 %v13
  %v30 = vunpack.c.h.b16 %v13
  %v31 = vunpack.c.l.b16 %v14
  %v32 = vunpack.c.h.b16 %v14
  %v33 = vunpack.c.l.b16 %v15
  %v34 = vunpack.c.h.b16 %v15
  %v35 = vunpack.c.l.b16 %v16
  %v36 = vunpack.c.h.b16 %v16
  %v37 = vunpack.c.l.b16 %v17
  %v38 = vunpack.c.h.b16 %v17
  %v39 = vunpack.c.l.b16 %v18
  %v40 = vunpack.c.h.b16 %v18
  %v41 = vunpack.c.l.b16 %v19
  %v42 = vunpack.c.h.b16 %v19
  %v43 = vunpack.c.l.b16 %v20
  %v44 = vunpack.c.h.b16 %v20
  %v45 = vpack.c.b16 %v33, %v29
  %v46 = vpack.c.b16 %v34, %v30
  %v47 = vpack.c.b16 %v35, %v31
  %v48 = vpack.c.b16 %v36, %v32
  %v49 = vpack.c.b16 %v41, %v37
  %v50 = vpack.c.b16 %v42, %v38
  %v51 = vpack.c.b16 %v43, %v39
  %v52 = vpack.c.b16 %v44, %v40
  %vm61 = vcmask 261120
  %v63 = vsel %vm61, %v12, 0
  %65 = vmatprep.subr.bf16.mxu0 0
  %66 = vmatpush1.bf16.msra.mxu0 0
  %67 = vmatprep.subr.bf16.mxu0 0
  %68 = vmatpush1.bf16.msra.mxu0 0
  %69 = vmatprep.subr.bf16.mxu0 0
  %70 = vmatpush1.bf16.msra.mxu0 0
  %71 = vmatprep.subr.bf16.mxu0 0
  %72 = vmatpush1.bf16.msra.mxu0 0
  %73 = vmatprep.subr.bf16.mxu0 0
  %74 = vmatpush1.bf16.msra.mxu0 0
  %75 = vmatprep.subr.bf16.mxu0 0
  %76 = vmatpush1.bf16.msra.mxu0 0
  %77 = vmatprep.subr.bf16.mxu0 %v50
  %78 = vmatpush1.bf16.msra.mxu0 %v49
  %79 = vmatprep.subr.bf16.mxu0 %v46
  %80 = vmatpush1.bf16.msra.mxu0 %v45
  %81 = vmatprep.subr.bf16.mxu0 0
  %82 = vmatpush2.bf16.msra.mxu0 0
  %83 = vmatprep.subr.bf16.mxu0 0
  %84 = vmatpush2.bf16.msra.mxu0 0
  %85 = vmatprep.subr.bf16.mxu0 0
  %86 = vmatpush2.bf16.msra.mxu0 0
  %87 = vmatprep.subr.bf16.mxu0 0
  %88 = vmatpush2.bf16.msra.mxu0 0
  %89 = vmatprep.subr.bf16.mxu0 0
  %90 = vmatpush2.bf16.msra.mxu0 0
  %91 = vmatprep.subr.bf16.mxu0 0
  %92 = vmatpush2.bf16.msra.mxu0 0
  %93 = vmatprep.subr.bf16.mxu0 0
  %94 = vmatpush2.bf16.msra.mxu0 0
  %95 = vmatprep.subr.bf16.mxu0 0
  %96 = vmatpush2.bf16.msra.mxu0 0
  %97 = vmatprep.mubr.bf16.mxu0 0
  %98 = vmatmul.mubr.bf16.gmra.mxu0 %v63
  %v99 = vpop.f32.mrf.mxu0
  %v100 = vadd.f32 0.0, %v99
  %v101 = vpop.f32.mrf.mxu0
  %v102 = vadd.f32 0.0, %v101
  %v103 = vpop.f32.mrf.mxu0
  %v104 = vpop.f32.mrf.mxu0
  %105 = vdwg.mxu0
  %106 = vmatprep.subr.bf16.mxu0 0
  %107 = vmatpush1.bf16.msra.mxu0 0
  %108 = vmatprep.subr.bf16.mxu0 0
  %109 = vmatpush1.bf16.msra.mxu0 0
  %110 = vmatprep.subr.bf16.mxu0 0
  %111 = vmatpush1.bf16.msra.mxu0 0
  %112 = vmatprep.subr.bf16.mxu0 0
  %113 = vmatpush1.bf16.msra.mxu0 0
  %114 = vmatprep.subr.bf16.mxu0 0
  %115 = vmatpush1.bf16.msra.mxu0 0
  %116 = vmatprep.subr.bf16.mxu0 0
  %117 = vmatpush1.bf16.msra.mxu0 0
  %118 = vmatprep.subr.bf16.mxu0 %v52
  %119 = vmatpush1.bf16.msra.mxu0 %v51
  %120 = vmatprep.subr.bf16.mxu0 %v48
  %121 = vmatpush1.bf16.msra.mxu0 %v47
  %122 = vmatprep.subr.bf16.mxu0 0
  %123 = vmatpush2.bf16.msra.mxu0 0
  %124 = vmatprep.subr.bf16.mxu0 0
  %125 = vmatpush2.bf16.msra.mxu0 0
  %126 = vmatprep.subr.bf16.mxu0 0
  %127 = vmatpush2.bf16.msra.mxu0 0
  %128 = vmatprep.subr.bf16.mxu0 0
  %129 = vmatpush2.bf16.msra.mxu0 0
  %130 = vmatprep.subr.bf16.mxu0 0
  %131 = vmatpush2.bf16.msra.mxu0 0
  %132 = vmatprep.subr.bf16.mxu0 0
  %133 = vmatpush2.bf16.msra.mxu0 0
  %134 = vmatprep.subr.bf16.mxu0 0
  %135 = vmatpush2.bf16.msra.mxu0 0
  %136 = vmatprep.subr.bf16.mxu0 0
  %137 = vmatpush2.bf16.msra.mxu0 0
  %138 = vmatprep.mubr.bf16.mxu0 0
  %139 = vmatmul.mubr.bf16.gmra.mxu0 %v63
  %v140 = vpop.f32.mrf.mxu0
  %v141 = vadd.f32 0.0, %v140
  %v142 = vpop.f32.mrf.mxu0
  %v143 = vadd.f32 0.0, %v142
  %v144 = vpop.f32.mrf.mxu0
  %v145 = vpop.f32.mrf.mxu0
  %146 = vdwg.mxu0
  %s147 = scalar_lea.vmem %s1, 2
  %v148 = vld [vmem:[%s147] sm:$0x3]
  %s149 = scalar_lea.vmem %s0, 64
  %v150 = vld [vmem:[%s149] sm:$0xff]
  %v151 = vld [vmem:[%s149 + $0x8] sm:$0xff]
  %v152 = vld [vmem:[%s149 + $0x10] sm:$0xff]
  %v153 = vld [vmem:[%s149 + $0x18] sm:$0xff]
  %v154 = vld [vmem:[%s149 + $0x20] sm:$0xff]
  %v155 = vld [vmem:[%s149 + $0x28] sm:$0xff]
  %v156 = vld [vmem:[%s149 + $0x30] sm:$0xff]
  %v157 = vld [vmem:[%s149 + $0x38] sm:$0xff]
  %v166 = vunpack.c.l.b16 %v150
  %v167 = vunpack.c.h.b16 %v150
  %v168 = vunpack.c.l.b16 %v151
  %v169 = vunpack.c.h.b16 %v151
  %v170 = vunpack.c.l.b16 %v152
  %v171 = vunpack.c.h.b16 %v152
  %v172 = vunpack.c.l.b16 %v153
  %v173 = vunpack.c.h.b16 %v153
  %v174 = vunpack.c.l.b16 %v154
  %v175 = vunpack.c.h.b16 %v154
  %v176 = vunpack.c.l.b16 %v155
  %v177 = vunpack.c.h.b16 %v155
  %v178 = vunpack.c.l.b16 %v156
  %v179 = vunpack.c.h.b16 %v156
  %v180 = vunpack.c.l.b16 %v157
  %v181 = vunpack.c.h.b16 %v157
  %v182 = vpack.c.b16 %v170, %v166
  %v183 = vpack.c.b16 %v171, %v167
  %v184 = vpack.c.b16 %v172, %v168
  %v185 = vpack.c.b16 %v173, %v169
  %v186 = vpack.c.b16 %v178, %v174
  %v187 = vpack.c.b16 %v179, %v175
  %v188 = vpack.c.b16 %v180, %v176
  %v189 = vpack.c.b16 %v181, %v177
  %v199 = vsel %vm61, %v148, 0
  %201 = vmatprep.subr.bf16.mxu0 0
  %202 = vmatpush1.bf16.msra.mxu0 0
  %203 = vmatprep.subr.bf16.mxu0 0
  %204 = vmatpush1.bf16.msra.mxu0 0
  %205 = vmatprep.subr.bf16.mxu0 0
  %206 = vmatpush1.bf16.msra.mxu0 0
  %207 = vmatprep.subr.bf16.mxu0 0
  %208 = vmatpush1.bf16.msra.mxu0 0
  %209 = vmatprep.subr.bf16.mxu0 0
  %210 = vmatpush1.bf16.msra.mxu0 0
  %211 = vmatprep.subr.bf16.mxu0 0
  %212 = vmatpush1.bf16.msra.mxu0 0
  %213 = vmatprep.subr.bf16.mxu0 %v187
  %214 = vmatpush1.bf16.msra.mxu0 %v186
  %215 = vmatprep.subr.bf16.mxu0 %v183
  %216 = vmatpush1.bf16.msra.mxu0 %v182
  %217 = vmatprep.subr.bf16.mxu0 0
  %218 = vmatpush2.bf16.msra.mxu0 0
  %219 = vmatprep.subr.bf16.mxu0 0
  %220 = vmatpush2.bf16.msra.mxu0 0
  %221 = vmatprep.subr.bf16.mxu0 0
  %222 = vmatpush2.bf16.msra.mxu0 0
  %223 = vmatprep.subr.bf16.mxu0 0
  %224 = vmatpush2.bf16.msra.mxu0 0
  %225 = vmatprep.subr.bf16.mxu0 0
  %226 = vmatpush2.bf16.msra.mxu0 0
  %227 = vmatprep.subr.bf16.mxu0 0
  %228 = vmatpush2.bf16.msra.mxu0 0
  %229 = vmatprep.subr.bf16.mxu0 0
  %230 = vmatpush2.bf16.msra.mxu0 0
  %231 = vmatprep.subr.bf16.mxu0 0
  %232 = vmatpush2.bf16.msra.mxu0 0
  %233 = vmatprep.mubr.bf16.mxu0 0
  %234 = vmatmul.mubr.bf16.gmra.mxu0 %v199
  %v235 = vpop.f32.mrf.mxu0
  %v236 = vadd.f32 0.0, %v235
  %v237 = vpop.f32.mrf.mxu0
  %v238 = vadd.f32 0.0, %v237
  %v239 = vpop.f32.mrf.mxu0
  %v240 = vpop.f32.mrf.mxu0
  %241 = vdwg.mxu0
  %242 = vmatprep.subr.bf16.mxu0 0
  %243 = vmatpush1.bf16.msra.mxu0 0
  %244 = vmatprep.subr.bf16.mxu0 0
  %245 = vmatpush1.bf16.msra.mxu0 0
  %246 = vmatprep.subr.bf16.mxu0 0
  %247 = vmatpush1.bf16.msra.mxu0 0
  %248 = vmatprep.subr.bf16.mxu0 0
  %249 = vmatpush1.bf16.msra.mxu0 0
  %250 = vmatprep.subr.bf16.mxu0 0
  %251 = vmatpush1.bf16.msra.mxu0 0
  %252 = vmatprep.subr.bf16.mxu0 0
  %253 = vmatpush1.bf16.msra.mxu0 0
  %254 = vmatprep.subr.bf16.mxu0 %v189
  %255 = vmatpush1.bf16.msra.mxu0 %v188
  %256 = vmatprep.subr.bf16.mxu0 %v185
  %257 = vmatpush1.bf16.msra.mxu0 %v184
  %258 = vmatprep.subr.bf16.mxu0 0
  %259 = vmatpush2.bf16.msra.mxu0 0
  %260 = vmatprep.subr.bf16.mxu0 0
  %261 = vmatpush2.bf16.msra.mxu0 0
  %262 = vmatprep.subr.bf16.mxu0 0
  %263 = vmatpush2.bf16.msra.mxu0 0
  %264 = vmatprep.subr.bf16.mxu0 0
  %265 = vmatpush2.bf16.msra.mxu0 0
  %266 = vmatprep.subr.bf16.mxu0 0
  %267 = vmatpush2.bf16.msra.mxu0 0
  %268 = vmatprep.subr.bf16.mxu0 0
  %269 = vmatpush2.bf16.msra.mxu0 0
  %270 = vmatprep.subr.bf16.mxu0 0
  %271 = vmatpush2.bf16.msra.mxu0 0
  %272 = vmatprep.subr.bf16.mxu0 0
  %273 = vmatpush2.bf16.msra.mxu0 0
  %274 = vmatprep.mubr.bf16.mxu0 0
  %275 = vmatmul.mubr.bf16.gmra.mxu0 %v199
  %v276 = vpop.f32.mrf.mxu0
  %v277 = vadd.f32 0.0, %v276
  %v278 = vpop.f32.mrf.mxu0
  %v279 = vadd.f32 0.0, %v278
  %v280 = vpop.f32.mrf.mxu0
  %v281 = vpop.f32.mrf.mxu0
  %282 = vdwg.mxu0
  %s283 = scalar_lea.vmem %s1, 4
  %v284 = vld [vmem:[%s283] sm:$0x3]
  %s285 = scalar_lea.vmem %s0, 128
  %v286 = vld [vmem:[%s285] sm:$0xff]
  %v287 = vld [vmem:[%s285 + $0x8] sm:$0xff]
  %v288 = vld [vmem:[%s285 + $0x10] sm:$0xff]
  %v289 = vld [vmem:[%s285 + $0x18] sm:$0xff]
  %v290 = vld [vmem:[%s285 + $0x20] sm:$0xff]
  %v291 = vld [vmem:[%s285 + $0x28] sm:$0xff]
  %v292 = vld [vmem:[%s285 + $0x30] sm:$0xff]
  %v293 = vld [vmem:[%s285 + $0x38] sm:$0xff]
  %v302 = vunpack.c.l.b16 %v286
  %v303 = vunpack.c.h.b16 %v286
  %v304 = vunpack.c.l.b16 %v287
  %v305 = vunpack.c.h.b16 %v287
  %v306 = vunpack.c.l.b16 %v288
  %v307 = vunpack.c.h.b16 %v288
  %v308 = vunpack.c.l.b16 %v289
  %v309 = vunpack.c.h.b16 %v289
  %v310 = vunpack.c.l.b16 %v290
  %v311 = vunpack.c.h.b16 %v290
  %v312 = vunpack.c.l.b16 %v291
  %v313 = vunpack.c.h.b16 %v291
  %v314 = vunpack.c.l.b16 %v292
  %v315 = vunpack.c.h.b16 %v292
  %v316 = vunpack.c.l.b16 %v293
  %v317 = vunpack.c.h.b16 %v293
  %v318 = vpack.c.b16 %v306, %v302
  %v319 = vpack.c.b16 %v307, %v303
  %v320 = vpack.c.b16 %v308, %v304
  %v321 = vpack.c.b16 %v309, %v305
  %v322 = vpack.c.b16 %v314, %v310
  %v323 = vpack.c.b16 %v315, %v311
  %v324 = vpack.c.b16 %v316, %v312
  %v325 = vpack.c.b16 %v317, %v313
  %v335 = vsel %vm61, %v284, 0
  %337 = vmatprep.subr.bf16.mxu0 0
  %338 = vmatpush1.bf16.msra.mxu0 0
  %339 = vmatprep.subr.bf16.mxu0 0
  %340 = vmatpush1.bf16.msra.mxu0 0
  %341 = vmatprep.subr.bf16.mxu0 0
  %342 = vmatpush1.bf16.msra.mxu0 0
  %343 = vmatprep.subr.bf16.mxu0 0
  %344 = vmatpush1.bf16.msra.mxu0 0
  %345 = vmatprep.subr.bf16.mxu0 0
  %346 = vmatpush1.bf16.msra.mxu0 0
  %347 = vmatprep.subr.bf16.mxu0 0
  %348 = vmatpush1.bf16.msra.mxu0 0
  %349 = vmatprep.subr.bf16.mxu0 %v323
  %350 = vmatpush1.bf16.msra.mxu0 %v322
  %351 = vmatprep.subr.bf16.mxu0 %v319
  %352 = vmatpush1.bf16.msra.mxu0 %v318
  %353 = vmatprep.subr.bf16.mxu0 0
  %354 = vmatpush2.bf16.msra.mxu0 0
  %355 = vmatprep.subr.bf16.mxu0 0
  %356 = vmatpush2.bf16.msra.mxu0 0
  %357 = vmatprep.subr.bf16.mxu0 0
  %358 = vmatpush2.bf16.msra.mxu0 0
  %359 = vmatprep.subr.bf16.mxu0 0
  %360 = vmatpush2.bf16.msra.mxu0 0
  %361 = vmatprep.subr.bf16.mxu0 0
  %362 = vmatpush2.bf16.msra.mxu0 0
  %363 = vmatprep.subr.bf16.mxu0 0
  %364 = vmatpush2.bf16.msra.mxu0 0
  %365 = vmatprep.subr.bf16.mxu0 0
  %366 = vmatpush2.bf16.msra.mxu0 0
  %367 = vmatprep.subr.bf16.mxu0 0
  %368 = vmatpush2.bf16.msra.mxu0 0
  %369 = vmatprep.mubr.bf16.mxu0 0
  %370 = vmatmul.mubr.bf16.gmra.mxu0 %v335
  %v371 = vpop.f32.mrf.mxu0
  %v372 = vadd.f32 0.0, %v371
  %v373 = vpop.f32.mrf.mxu0
  %v374 = vadd.f32 0.0, %v373
  %v375 = vpop.f32.mrf.mxu0
  %v376 = vpop.f32.mrf.mxu0
  %377 = vdwg.mxu0
  %378 = vmatprep.subr.bf16.mxu0 0
  %379 = vmatpush1.bf16.msra.mxu0 0
  %380 = vmatprep.subr.bf16.mxu0 0
  %381 = vmatpush1.bf16.msra.mxu0 0
  %382 = vmatprep.subr.bf16.mxu0 0
  %383 = vmatpush1.bf16.msra.mxu0 0
  %384 = vmatprep.subr.bf16.mxu0 0
  %385 = vmatpush1.bf16.msra.mxu0 0
  %386 = vmatprep.subr.bf16.mxu0 0
  %387 = vmatpush1.bf16.msra.mxu0 0
  %388 = vmatprep.subr.bf16.mxu0 0
  %389 = vmatpush1.bf16.msra.mxu0 0
  %390 = vmatprep.subr.bf16.mxu0 %v325
  %391 = vmatpush1.bf16.msra.mxu0 %v324
  %392 = vmatprep.subr.bf16.mxu0 %v321
  %393 = vmatpush1.bf16.msra.mxu0 %v320
  %394 = vmatprep.subr.bf16.mxu0 0
  %395 = vmatpush2.bf16.msra.mxu0 0
  %396 = vmatprep.subr.bf16.mxu0 0
  %397 = vmatpush2.bf16.msra.mxu0 0
  %398 = vmatprep.subr.bf16.mxu0 0
  %399 = vmatpush2.bf16.msra.mxu0 0
  %400 = vmatprep.subr.bf16.mxu0 0
  %401 = vmatpush2.bf16.msra.mxu0 0
  %402 = vmatprep.subr.bf16.mxu0 0
  %403 = vmatpush2.bf16.msra.mxu0 0
  %404 = vmatprep.subr.bf16.mxu0 0
  %405 = vmatpush2.bf16.msra.mxu0 0
  %406 = vmatprep.subr.bf16.mxu0 0
  %407 = vmatpush2.bf16.msra.mxu0 0
  %408 = vmatprep.subr.bf16.mxu0 0
  %409 = vmatpush2.bf16.msra.mxu0 0
  %410 = vmatprep.mubr.bf16.mxu0 0
  %411 = vmatmul.mubr.bf16.gmra.mxu0 %v335
  %v412 = vpop.f32.mrf.mxu0
  %v413 = vadd.f32 0.0, %v412
  %v414 = vpop.f32.mrf.mxu0
  %v415 = vadd.f32 0.0, %v414
  %v416 = vpop.f32.mrf.mxu0
  %v417 = vpop.f32.mrf.mxu0
  %418 = vdwg.mxu0
  %s419 = scalar_lea.vmem %s1, 6
  %v420 = vld [vmem:[%s419] sm:$0x3]
  %s421 = scalar_lea.vmem %s0, 192
  %v422 = vld [vmem:[%s421] sm:$0xff]
  %v423 = vld [vmem:[%s421 + $0x8] sm:$0xff]
  %v424 = vld [vmem:[%s421 + $0x10] sm:$0xff]
  %v425 = vld [vmem:[%s421 + $0x18] sm:$0xff]
  %v426 = vld [vmem:[%s421 + $0x20] sm:$0xff]
  %v427 = vld [vmem:[%s421 + $0x28] sm:$0xff]
  %v428 = vld [vmem:[%s421 + $0x30] sm:$0xff]
  %v429 = vld [vmem:[%s421 + $0x38] sm:$0xff]
  %v438 = vunpack.c.l.b16 %v422
  %v439 = vunpack.c.h.b16 %v422
  %v440 = vunpack.c.l.b16 %v423
  %v441 = vunpack.c.h.b16 %v423
  %v442 = vunpack.c.l.b16 %v424
  %v443 = vunpack.c.h.b16 %v424
  %v444 = vunpack.c.l.b16 %v425
  %v445 = vunpack.c.h.b16 %v425
  %v446 = vunpack.c.l.b16 %v426
  %v447 = vunpack.c.h.b16 %v426
  %v448 = vunpack.c.l.b16 %v427
  %v449 = vunpack.c.h.b16 %v427
  %v450 = vunpack.c.l.b16 %v428
  %v451 = vunpack.c.h.b16 %v428
  %v452 = vunpack.c.l.b16 %v429
  %v453 = vunpack.c.h.b16 %v429
  %v454 = vpack.c.b16 %v442, %v438
  %v455 = vpack.c.b16 %v443, %v439
  %v456 = vpack.c.b16 %v444, %v440
  %v457 = vpack.c.b16 %v445, %v441
  %v458 = vpack.c.b16 %v450, %v446
  %v459 = vpack.c.b16 %v451, %v447
  %v460 = vpack.c.b16 %v452, %v448
  %v461 = vpack.c.b16 %v453, %v449
  %v471 = vsel %vm61, %v420, 0
  %473 = vmatprep.subr.bf16.mxu0 0
  %474 = vmatpush1.bf16.msra.mxu0 0
  %475 = vmatprep.subr.bf16.mxu0 0
  %476 = vmatpush1.bf16.msra.mxu0 0
  %477 = vmatprep.subr.bf16.mxu0 0
  %478 = vmatpush1.bf16.msra.mxu0 0
  %479 = vmatprep.subr.bf16.mxu0 0
  %480 = vmatpush1.bf16.msra.mxu0 0
  %481 = vmatprep.subr.bf16.mxu0 0
  %482 = vmatpush1.bf16.msra.mxu0 0
  %483 = vmatprep.subr.bf16.mxu0 0
  %484 = vmatpush1.bf16.msra.mxu0 0
  %485 = vmatprep.subr.bf16.mxu0 %v459
  %486 = vmatpush1.bf16.msra.mxu0 %v458
  %487 = vmatprep.subr.bf16.mxu0 %v455
  %488 = vmatpush1.bf16.msra.mxu0 %v454
  %489 = vmatprep.subr.bf16.mxu0 0
  %490 = vmatpush2.bf16.msra.mxu0 0
  %491 = vmatprep.subr.bf16.mxu0 0
  %492 = vmatpush2.bf16.msra.mxu0 0
  %493 = vmatprep.subr.bf16.mxu0 0
  %494 = vmatpush2.bf16.msra.mxu0 0
  %495 = vmatprep.subr.bf16.mxu0 0
  %496 = vmatpush2.bf16.msra.mxu0 0
  %497 = vmatprep.subr.bf16.mxu0 0
  %498 = vmatpush2.bf16.msra.mxu0 0
  %499 = vmatprep.subr.bf16.mxu0 0
  %500 = vmatpush2.bf16.msra.mxu0 0
  %501 = vmatprep.subr.bf16.mxu0 0
  %502 = vmatpush2.bf16.msra.mxu0 0
  %503 = vmatprep.subr.bf16.mxu0 0
  %504 = vmatpush2.bf16.msra.mxu0 0
  %505 = vmatprep.mubr.bf16.mxu0 0
  %506 = vmatmul.mubr.bf16.gmra.mxu0 %v471
  %v507 = vpop.f32.mrf.mxu0
  %v508 = vadd.f32 0.0, %v507
  %v509 = vpop.f32.mrf.mxu0
  %v510 = vadd.f32 0.0, %v509
  %v511 = vpop.f32.mrf.mxu0
  %v512 = vpop.f32.mrf.mxu0
  %513 = vdwg.mxu0
  %514 = vmatprep.subr.bf16.mxu0 0
  %515 = vmatpush1.bf16.msra.mxu0 0
  %516 = vmatprep.subr.bf16.mxu0 0
  %517 = vmatpush1.bf16.msra.mxu0 0
  %518 = vmatprep.subr.bf16.mxu0 0
  %519 = vmatpush1.bf16.msra.mxu0 0
  %520 = vmatprep.subr.bf16.mxu0 0
  %521 = vmatpush1.bf16.msra.mxu0 0
  %522 = vmatprep.subr.bf16.mxu0 0
  %523 = vmatpush1.bf16.msra.mxu0 0
  %524 = vmatprep.subr.bf16.mxu0 0
  %525 = vmatpush1.bf16.msra.mxu0 0
  %526 = vmatprep.subr.bf16.mxu0 %v461
  %527 = vmatpush1.bf16.msra.mxu0 %v460
  %528 = vmatprep.subr.bf16.mxu0 %v457
  %529 = vmatpush1.bf16.msra.mxu0 %v456
  %530 = vmatprep.subr.bf16.mxu0 0
  %531 = vmatpush2.bf16.msra.mxu0 0
  %532 = vmatprep.subr.bf16.mxu0 0
  %533 = vmatpush2.bf16.msra.mxu0 0
  %534 = vmatprep.subr.bf16.mxu0 0
  %535 = vmatpush2.bf16.msra.mxu0 0
  %536 = vmatprep.subr.bf16.mxu0 0
  %537 = vmatpush2.bf16.msra.mxu0 0
  %538 = vmatprep.subr.bf16.mxu0 0
  %539 = vmatpush2.bf16.msra.mxu0 0
  %540 = vmatprep.subr.bf16.mxu0 0
  %541 = vmatpush2.bf16.msra.mxu0 0
  %542 = vmatprep.subr.bf16.mxu0 0
  %543 = vmatpush2.bf16.msra.mxu0 0
  %544 = vmatprep.subr.bf16.mxu0 0
  %545 = vmatpush2.bf16.msra.mxu0 0
  %546 = vmatprep.mubr.bf16.mxu0 0
  %547 = vmatmul.mubr.bf16.gmra.mxu0 %v471
  %v548 = vpop.f32.mrf.mxu0
  %v549 = vadd.f32 0.0, %v548
  %v550 = vpop.f32.mrf.mxu0
  %v551 = vadd.f32 0.0, %v550
  %v552 = vpop.f32.mrf.mxu0
  %v553 = vpop.f32.mrf.mxu0
  %554 = vdwg.mxu0
  %v555 = vtanh.pop %v100
  %v556 = vtanh.pop %v102
  %v557 = vtanh.pop %v141
  %v558 = vtanh.pop %v143
  %v563 = vcombine.low %v555, %v556
  %v564 = vcombine.low %v557, %v558
  %567 = vst [vmem:[%s2] sm:$0x77] %v563
  %568 = vst [vmem:[%s2 + $0x8] sm:$0x77] %v564
  %v569 = vtanh.pop %v236
  %v570 = vtanh.pop %v238
  %v571 = vtanh.pop %v277
  %v572 = vtanh.pop %v279
  %v577 = vcombine.low %v569, %v570
  %v578 = vcombine.low %v571, %v572
  %s581 = scalar_lea.vmem %s2, 16
  %582 = vst [vmem:[%s581] sm:$0x77] %v577
  %583 = vst [vmem:[%s581 + $0x8] sm:$0x77] %v578
  %v584 = vtanh.pop %v372
  %v585 = vtanh.pop %v374
  %v586 = vtanh.pop %v413
  %v587 = vtanh.pop %v415
  %v592 = vcombine.low %v584, %v585
  %v593 = vcombine.low %v586, %v587
  %s596 = scalar_lea.vmem %s2, 32
  %597 = vst [vmem:[%s596] sm:$0x77] %v592
  %598 = vst [vmem:[%s596 + $0x8] sm:$0x77] %v593
  %v599 = vtanh.pop %v508
  %v600 = vtanh.pop %v510
  %v601 = vtanh.pop %v549
  %v602 = vtanh.pop %v551
  %v607 = vcombine.low %v599, %v600
  %v608 = vcombine.low %v601, %v602
  %s611 = scalar_lea.vmem %s2, 48
  %612 = vst [vmem:[%s611] sm:$0x77] %v607
  %613 = vst [vmem:[%s611 + $0x8] sm:$0x77] %v608
  // Predicated region
  $region10: #{_lambda_.7} parent=0 // pred_check
    _
  $region11: #{_lambda_.7} parent=0 // pred_check_branch
    %615 = sbr.rel (0) target = $region13
  $region12: #{_lambda_.7} parent=0 // pred_region
    _
  $region13: #{_lambda_.7} parent=0 // pred_fallthru
    _
  // Predicated region
  $region14: #{_lambda_.7} parent=0 // pred_check
    _
  $region15: #{_lambda_.7} parent=0 // pred_check_branch
    %617 = sbr.rel (0) target = $region17
  $region16: #{_lambda_.7} parent=0 // pred_region
    _
  $region17: #{_lambda_.7} parent=0 // pred_fallthru
    _

</llo_original>
